<compile_context>
chip_gen: v7x
topology: tpu7x:2x2x1
jax: 0.10.0
libtpu: 0.0.40
codegen_flags: <defaults>
</compile_context>

<pallas_src>
import functools
import math

import jax
import jax.numpy as jnp
from jax import lax
from jax.experimental import pallas as pl
from jax.experimental.pallas import tpu as pltpu


# ------------------------------ Pallas kernel -------------------------------
def _attn_kernel(x_ref, wa_ref, wp_ref, b_ref, o_ref, *, n_head, scale):
    bB, T, C = x_ref.shape
    H = n_head
    hd = C // H

    wa = wa_ref[...]                        # (C, 3C)  head-major columns
    wp = wp_ref[...]                        # (C, C)
    bias = b_ref[...]                       # (1, 4C)  [qkv bias (head-major) | proj bias]
    b_qkv = bias[:, :3 * C]                 # (1, 3C)
    b_out = bias[:, 3 * C:4 * C]            # (1, C)

    # Causal mask, hoisted out of the batch loop. Row i always keeps col 0,
    # so exp/normalize never sees an all-masked row.
    rows = lax.broadcasted_iota(jnp.int32, (H, T, T), 1)
    cols = lax.broadcasted_iota(jnp.int32, (H, T, T), 2)
    causal = cols <= rows

    for b in range(bB):                     # static; bB is 1 (v7x) or B (v5e/v6e)
        x = x_ref[b]                        # (T, C)

        # --- QKV projection: one MXU push, contraction dim = C ---
        qkv = jnp.dot(x, wa, preferred_element_type=jnp.float32) + b_qkv    # (T, 3C)

        # --- split heads (static lane slices; columns already head-major) ---
        qkv_h = jnp.stack(
            [qkv[:, h * 3 * hd:(h + 1) * 3 * hd] for h in range(H)])        # (H, T, 3hd)
        q = qkv_h[:, :, 0 * hd:1 * hd]      # (H, T, hd)
        k = qkv_h[:, :, 1 * hd:2 * hd]
        v = qkv_h[:, :, 2 * hd:3 * hd]

        # --- attention scores: head-batched dot, contract on hd (no k transpose) ---
        att = lax.dot_general(q, k, (((2,), (2,)), ((0,), (0,))),
                              preferred_element_type=jnp.float32) * scale   # (H, T, T)
        att = jnp.where(causal, att, -jnp.inf)
        att = jnp.exp(att - jnp.max(att, axis=-1, keepdims=True))
        att = att / jnp.sum(att, axis=-1, keepdims=True)    # exact divide (correctness)

        # --- weighted values ---
        out = lax.dot_general(att, v, (((2,), (1,)), ((0,), (0,))),
                              preferred_element_type=jnp.float32)           # (H, T, hd)

        # --- merge heads, then output projection + head-sum as ONE matmul ---
        out_cat = jnp.concatenate([out[h] for h in range(H)], axis=-1)      # (T, C)
        y = jnp.dot(out_cat, wp, preferred_element_type=jnp.float32) + b_out
        o_ref[b] = y.astype(o_ref.dtype)


# --------------------------------- wrapper -----------------------------------
def _per_step_batch(B):
    # One grid step on single-TensorCore chips (v5e/v6e); keep grid=(B,) only
    # when there are multiple TensorCores per chip (v7x) to shard batch.
    try:
        kind = jax.devices()[0].device_kind.lower()
    except Exception:
        kind = ""
    multi_tc = ("v7" in kind) or ("7x" in kind)
    return 1 if (multi_tc and B > 1) else B


def causal_self_attention(x, w_attn, b_attn, w_proj, b_proj, *, n_head):
    """x: (B,T,C); w_attn: (C,3C); b_attn: (3C,); w_proj: (C,C); b_proj: (C,).

    Weights use the `y = x @ W + b` layout (transpose of nn.Linear's weight),
    matching the pure-JAX reference below.
    """
    B, T, C = x.shape
    assert C % n_head == 0
    hd = C // n_head

    # One-time repacking in XLA, off the kernel hot path.
    # QKV weight/bias columns permuted head-major: col = h*(3*hd) + s*hd + d.
    wa = w_attn.reshape(C, 3, n_head, hd).transpose(0, 2, 1, 3).reshape(C, 3 * C)
    ba = b_attn.reshape(3, n_head, hd).transpose(1, 0, 2).reshape(3 * C)
    b_slab = jnp.concatenate([ba, b_proj]).reshape(1, 4 * C)   # one lane-dense tile

    bB = _per_step_batch(B)
    grid = (B // bB,)

    kernel = functools.partial(_attn_kernel, n_head=n_head,
                               scale=1.0 / math.sqrt(hd))
    return pl.pallas_call(
        kernel,
        out_shape=jax.ShapeDtypeStruct((B, T, C), x.dtype),
        grid_spec=pltpu.PrefetchScalarGridSpec(
            num_scalar_prefetch=0,
            grid=grid,
            in_specs=[
                pl.BlockSpec((bB, T, C), lambda g: (g, 0, 0)),
                pl.BlockSpec((C, 3 * C), lambda g: (0, 0)),
                pl.BlockSpec((C, C), lambda g: (0, 0)),
                pl.BlockSpec((1, 4 * C), lambda g: (0, 0)),
            ],
            out_specs=pl.BlockSpec((bB, T, C), lambda g: (g, 0, 0)),
        ),
        compiler_params=pltpu.CompilerParams(
            dimension_semantics=("parallel",)),
    )(x, wa, w_proj, b_slab)


# ---------------------------- pure-JAX reference ------------------------------
def causal_self_attention_ref(x, w_attn, b_attn, w_proj, b_proj, *, n_head):
    B, T, C = x.shape
    hd = C // n_head
    hp = lax.Precision.HIGHEST
    qkv = jnp.einsum("btc,cd->btd", x, w_attn, precision=hp) + b_attn
    q, k, v = jnp.split(qkv, 3, axis=-1)
    q = q.reshape(B, T, n_head, hd).transpose(0, 2, 1, 3)
    k = k.reshape(B, T, n_head, hd).transpose(0, 2, 1, 3)
    v = v.reshape(B, T, n_head, hd).transpose(0, 2, 1, 3)
    att = jnp.einsum("bhqd,bhkd->bhqk", q, k, precision=hp) * (1.0 / math.sqrt(hd))
    mask = jnp.tril(jnp.ones((T, T), dtype=bool))
    att = jnp.where(mask, att, -jnp.inf)
    att = jax.nn.softmax(att, axis=-1)
    y = jnp.einsum("bhqk,bhkd->bhqd", att, v, precision=hp)
    y = y.transpose(0, 2, 1, 3).reshape(B, T, C)
    return jnp.einsum("btc,cd->btd", y, w_proj, precision=hp) + b_proj


# ----------------------------------- main -------------------------------------
if __name__ == "__main__":
    B, T, C, H = 2, 8, 32, 4

    key = jax.random.PRNGKey(0)
    kx, k1, k2, k3, k4 = jax.random.split(key, 5)
    x = jax.random.normal(kx, (B, T, C), jnp.float32)
    w_attn = jax.random.normal(k1, (C, 3 * C), jnp.float32) / math.sqrt(C)
    b_attn = 0.1 * jax.random.normal(k2, (3 * C,), jnp.float32)
    w_proj = jax.random.normal(k3, (C, C), jnp.float32) / math.sqrt(C)
    b_proj = 0.1 * jax.random.normal(k4, (C,), jnp.float32)

    y = causal_self_attention(x, w_attn, b_attn, w_proj, b_proj, n_head=H)
    y = jax.block_until_ready(y)
    assert y.shape == (B, T, C), y.shape

    ref = causal_self_attention_ref(x, w_attn, b_attn, w_proj, b_proj, n_head=H)
    max_err = float(jnp.max(jnp.abs(y - ref)))
    assert jnp.allclose(y, ref, atol=1e-3, rtol=1e-3), max_err

    print("KERNEL_OK")
</pallas_src>

<mosaic_0001>
module attributes {stable_mosaic.version = 11 : i64} {
  func.func @_attn_kernel(%arg0: i32, %arg1: memref<2x8x32xf32, #tpu.memory_space<vmem>>, %arg2: memref<32x96xf32, #tpu.memory_space<vmem>>, %arg3: memref<32x32xf32, #tpu.memory_space<vmem>>, %arg4: memref<1x128xf32, #tpu.memory_space<vmem>>, %arg5: memref<2x8x32xf32, #tpu.memory_space<vmem>>) attributes {dimension_semantics = [#tpu.dimension_semantics<parallel>], iteration_bounds = array<i64: 1>, scalar_prefetch = 0 : i64, scratch_operands = 0 : i64, tpu.core_type = #tpu.core_type<tc>, window_params = [{transform_indices = @transform_0, window_bounds = array<i64: 2, 8, 32>}, {pipeline_mode = #tpu.pipeline_mode<synchronous>, transform_indices = @transform_1, window_bounds = array<i64: 32, 96>}, {pipeline_mode = #tpu.pipeline_mode<synchronous>, transform_indices = @transform_2, window_bounds = array<i64: 32, 32>}, {pipeline_mode = #tpu.pipeline_mode<synchronous>, transform_indices = @transform_3, window_bounds = array<i64: 1, 128>}, {transform_indices = @transform_4, window_bounds = array<i64: 2, 8, 32>}]} {
    %c0 = arith.constant 0 : index
    %c0_0 = arith.constant 0 : index
    %0 = vector.load %arg2[%c0, %c0_0] : memref<32x96xf32, #tpu.memory_space<vmem>>, vector<32x96xf32>
    %c0_1 = arith.constant 0 : index
    %c0_2 = arith.constant 0 : index
    %1 = vector.load %arg3[%c0_1, %c0_2] : memref<32x32xf32, #tpu.memory_space<vmem>>, vector<32x32xf32>
    %c0_3 = arith.constant 0 : index
    %c0_4 = arith.constant 0 : index
    %2 = vector.load %arg4[%c0_3, %c0_4] : memref<1x128xf32, #tpu.memory_space<vmem>>, vector<1x128xf32>
    %3 = vector.extract_strided_slice %2 {offsets = [0, 0], sizes = [1, 96], strides = [1, 1]} : vector<1x128xf32> to vector<1x96xf32>
    %4 = vector.extract_strided_slice %2 {offsets = [0, 96], sizes = [1, 32], strides = [1, 1]} : vector<1x128xf32> to vector<1x32xf32>
    %5 = tpu.iota {dimensions = array<i32: 1>} : vector<4x8x8xi32>
    %6 = tpu.iota {dimensions = array<i32: 2>} : vector<4x8x8xi32>
    %7 = arith.cmpi sle, %6, %5 : vector<4x8x8xi32>
    %c0_5 = arith.constant 0 : index
    %c0_6 = arith.constant 0 : index
    %c0_7 = arith.constant 0 : index
    %8 = vector.load %arg1[%c0_5, %c0_6, %c0_7] : memref<2x8x32xf32, #tpu.memory_space<vmem>>, vector<1x8x32xf32>
    %9 = vector.shape_cast %8 : vector<1x8x32xf32> to vector<8x32xf32>
    %cst = arith.constant dense<0.000000e+00> : vector<8x96xf32>
    %10 = tpu.matmul %9, %0, %cst {dimension_numbers = #tpu.dot_dimension_numbers<[1], [0], [0], [1], [0, 0, 1, 1], [], []>} : vector<8x32xf32>, vector<32x96xf32>, vector<8x96xf32> -> vector<8x96xf32>
    %11 = vector.broadcast %3 : vector<1x96xf32> to vector<8x96xf32>
    %12 = arith.addf %10, %11 : vector<8x96xf32>
    %13 = vector.extract_strided_slice %12 {offsets = [0, 0], sizes = [8, 24], strides = [1, 1]} : vector<8x96xf32> to vector<8x24xf32>
    %14 = vector.extract_strided_slice %12 {offsets = [0, 24], sizes = [8, 24], strides = [1, 1]} : vector<8x96xf32> to vector<8x24xf32>
    %15 = vector.extract_strided_slice %12 {offsets = [0, 48], sizes = [8, 24], strides = [1, 1]} : vector<8x96xf32> to vector<8x24xf32>
    %16 = vector.extract_strided_slice %12 {offsets = [0, 72], sizes = [8, 24], strides = [1, 1]} : vector<8x96xf32> to vector<8x24xf32>
    %17 = vector.shape_cast %13 : vector<8x24xf32> to vector<1x8x24xf32>
    %18 = vector.shape_cast %14 : vector<8x24xf32> to vector<1x8x24xf32>
    %19 = vector.shape_cast %15 : vector<8x24xf32> to vector<1x8x24xf32>
    %20 = vector.shape_cast %16 : vector<8x24xf32> to vector<1x8x24xf32>
    %21 = tpu.concatenate %17, %18, %19, %20 in 0 : vector<1x8x24xf32>, vector<1x8x24xf32>, vector<1x8x24xf32>, vector<1x8x24xf32> -> vector<4x8x24xf32>
    %22 = vector.extract_strided_slice %21 {offsets = [0, 0, 0], sizes = [4, 8, 8], strides = [1, 1, 1]} : vector<4x8x24xf32> to vector<4x8x8xf32>
    %23 = vector.extract_strided_slice %21 {offsets = [0, 0, 8], sizes = [4, 8, 8], strides = [1, 1, 1]} : vector<4x8x24xf32> to vector<4x8x8xf32>
    %24 = vector.extract_strided_slice %21 {offsets = [0, 0, 16], sizes = [4, 8, 8], strides = [1, 1, 1]} : vector<4x8x24xf32> to vector<4x8x8xf32>
    %cst_8 = arith.constant dense<0.000000e+00> : vector<4x8x8xf32>
    %25 = tpu.matmul %22, %23, %cst_8 {dimension_numbers = #tpu.dot_dimension_numbers<[2], [2], [1], [1], [0, 0, 0, 1, 1, 1], [0], [0]>} : vector<4x8x8xf32>, vector<4x8x8xf32>, vector<4x8x8xf32> -> vector<4x8x8xf32>
    %cst_9 = arith.constant 0.353553385 : f32
    %26 = vector.broadcast %cst_9 : f32 to vector<4x8x8xf32>
    %27 = arith.mulf %25, %26 : vector<4x8x8xf32>
    %cst_10 = arith.constant 0xFF800000 : f32
    %28 = vector.broadcast %cst_10 : f32 to vector<4x8x8xf32>
    %29 = arith.select %7, %27, %28 : vector<4x8x8xi1>, vector<4x8x8xf32>
    %cst_11 = arith.constant dense<0xFF800000> : vector<4x8xf32>
    %30 = vector.multi_reduction <maximumf>, %29, %cst_11 [2] : vector<4x8x8xf32> to vector<4x8xf32>
    %31 = vector.shape_cast %30 : vector<4x8xf32> to vector<4x8x1xf32>
    %32 = vector.broadcast %31 : vector<4x8x1xf32> to vector<4x8x8xf32>
    %33 = arith.subf %29, %32 : vector<4x8x8xf32>
    %34 = math.exp %33 : vector<4x8x8xf32>
    %cst_12 = arith.constant dense<0.000000e+00> : vector<4x8xf32>
    %35 = vector.multi_reduction <add>, %34, %cst_12 [2] : vector<4x8x8xf32> to vector<4x8xf32>
    %36 = vector.shape_cast %35 : vector<4x8xf32> to vector<4x8x1xf32>
    %37 = vector.broadcast %36 : vector<4x8x1xf32> to vector<4x8x8xf32>
    %38 = arith.divf %34, %37 : vector<4x8x8xf32>
    %cst_13 = arith.constant dense<0.000000e+00> : vector<4x8x8xf32>
    %39 = tpu.matmul %38, %24, %cst_13 {dimension_numbers = #tpu.dot_dimension_numbers<[2], [1], [1], [2], [0, 0, 0, 1, 1, 2], [0], [0]>} : vector<4x8x8xf32>, vector<4x8x8xf32>, vector<4x8x8xf32> -> vector<4x8x8xf32>
    %40 = vector.extract_strided_slice %39 {offsets = [0, 0, 0], sizes = [1, 8, 8], strides = [1, 1, 1]} : vector<4x8x8xf32> to vector<1x8x8xf32>
    %41 = vector.shape_cast %40 : vector<1x8x8xf32> to vector<8x8xf32>
    %42 = vector.extract_strided_slice %39 {offsets = [1, 0, 0], sizes = [1, 8, 8], strides = [1, 1, 1]} : vector<4x8x8xf32> to vector<1x8x8xf32>
    %43 = vector.shape_cast %42 : vector<1x8x8xf32> to vector<8x8xf32>
    %44 = vector.extract_strided_slice %39 {offsets = [2, 0, 0], sizes = [1, 8, 8], strides = [1, 1, 1]} : vector<4x8x8xf32> to vector<1x8x8xf32>
    %45 = vector.shape_cast %44 : vector<1x8x8xf32> to vector<8x8xf32>
    %46 = vector.extract_strided_slice %39 {offsets = [3, 0, 0], sizes = [1, 8, 8], strides = [1, 1, 1]} : vector<4x8x8xf32> to vector<1x8x8xf32>
    %47 = vector.shape_cast %46 : vector<1x8x8xf32> to vector<8x8xf32>
    %48 = tpu.concatenate %41, %43, %45, %47 in 1 : vector<8x8xf32>, vector<8x8xf32>, vector<8x8xf32>, vector<8x8xf32> -> vector<8x32xf32>
    %cst_14 = arith.constant dense<0.000000e+00> : vector<8x32xf32>
    %49 = tpu.matmul %48, %1, %cst_14 {dimension_numbers = #tpu.dot_dimension_numbers<[1], [0], [0], [1], [0, 0, 1, 1], [], []>} : vector<8x32xf32>, vector<32x32xf32>, vector<8x32xf32> -> vector<8x32xf32>
    %50 = vector.broadcast %4 : vector<1x32xf32> to vector<8x32xf32>
    %51 = arith.addf %49, %50 : vector<8x32xf32>
    %c0_15 = arith.constant 0 : index
    %c0_16 = arith.constant 0 : index
    %c0_17 = arith.constant 0 : index
    %52 = vector.load %arg5[%c0_15, %c0_16, %c0_17] : memref<2x8x32xf32, #tpu.memory_space<vmem>>, vector<1x8x32xf32>
    %53 = vector.shape_cast %52 : vector<1x8x32xf32> to vector<8x32xf32>
    %54 = vector.shape_cast %51 : vector<8x32xf32> to vector<1x8x32xf32>
    tpu.vector_store %arg5[%c0_15, %c0_16, %c0_17], %54 {strides = array<i32>} : memref<2x8x32xf32, #tpu.memory_space<vmem>>, vector<1x8x32xf32>,
    %c1 = arith.constant 1 : index
    %c0_18 = arith.constant 0 : index
    %c0_19 = arith.constant 0 : index
    %55 = vector.load %arg1[%c1, %c0_18, %c0_19] : memref<2x8x32xf32, #tpu.memory_space<vmem>>, vector<1x8x32xf32>
    %56 = vector.shape_cast %55 : vector<1x8x32xf32> to vector<8x32xf32>
    %cst_20 = arith.constant dense<0.000000e+00> : vector<8x96xf32>
    %57 = tpu.matmul %56, %0, %cst_20 {dimension_numbers = #tpu.dot_dimension_numbers<[1], [0], [0], [1], [0, 0, 1, 1], [], []>} : vector<8x32xf32>, vector<32x96xf32>, vector<8x96xf32> -> vector<8x96xf32>
    %58 = vector.broadcast %3 : vector<1x96xf32> to vector<8x96xf32>
    %59 = arith.addf %57, %58 : vector<8x96xf32>
    %60 = vector.extract_strided_slice %59 {offsets = [0, 0], sizes = [8, 24], strides = [1, 1]} : vector<8x96xf32> to vector<8x24xf32>
    %61 = vector.extract_strided_slice %59 {offsets = [0, 24], sizes = [8, 24], strides = [1, 1]} : vector<8x96xf32> to vector<8x24xf32>
    %62 = vector.extract_strided_slice %59 {offsets = [0, 48], sizes = [8, 24], strides = [1, 1]} : vector<8x96xf32> to vector<8x24xf32>
    %63 = vector.extract_strided_slice %59 {offsets = [0, 72], sizes = [8, 24], strides = [1, 1]} : vector<8x96xf32> to vector<8x24xf32>
    %64 = vector.shape_cast %60 : vector<8x24xf32> to vector<1x8x24xf32>
    %65 = vector.shape_cast %61 : vector<8x24xf32> to vector<1x8x24xf32>
    %66 = vector.shape_cast %62 : vector<8x24xf32> to vector<1x8x24xf32>
    %67 = vector.shape_cast %63 : vector<8x24xf32> to vector<1x8x24xf32>
    %68 = tpu.concatenate %64, %65, %66, %67 in 0 : vector<1x8x24xf32>, vector<1x8x24xf32>, vector<1x8x24xf32>, vector<1x8x24xf32> -> vector<4x8x24xf32>
    %69 = vector.extract_strided_slice %68 {offsets = [0, 0, 0], sizes = [4, 8, 8], strides = [1, 1, 1]} : vector<4x8x24xf32> to vector<4x8x8xf32>
    %70 = vector.extract_strided_slice %68 {offsets = [0, 0, 8], sizes = [4, 8, 8], strides = [1, 1, 1]} : vector<4x8x24xf32> to vector<4x8x8xf32>
    %71 = vector.extract_strided_slice %68 {offsets = [0, 0, 16], sizes = [4, 8, 8], strides = [1, 1, 1]} : vector<4x8x24xf32> to vector<4x8x8xf32>
    %cst_21 = arith.constant dense<0.000000e+00> : vector<4x8x8xf32>
    %72 = tpu.matmul %69, %70, %cst_21 {dimension_numbers = #tpu.dot_dimension_numbers<[2], [2], [1], [1], [0, 0, 0, 1, 1, 1], [0], [0]>} : vector<4x8x8xf32>, vector<4x8x8xf32>, vector<4x8x8xf32> -> vector<4x8x8xf32>
    %cst_22 = arith.constant 0.353553385 : f32
    %73 = vector.broadcast %cst_22 : f32 to vector<4x8x8xf32>
    %74 = arith.mulf %72, %73 : vector<4x8x8xf32>
    %cst_23 = arith.constant 0xFF800000 : f32
    %75 = vector.broadcast %cst_23 : f32 to vector<4x8x8xf32>
    %76 = arith.select %7, %74, %75 : vector<4x8x8xi1>, vector<4x8x8xf32>
    %cst_24 = arith.constant dense<0xFF800000> : vector<4x8xf32>
    %77 = vector.multi_reduction <maximumf>, %76, %cst_24 [2] : vector<4x8x8xf32> to vector<4x8xf32>
    %78 = vector.shape_cast %77 : vector<4x8xf32> to vector<4x8x1xf32>
    %79 = vector.broadcast %78 : vector<4x8x1xf32> to vector<4x8x8xf32>
    %80 = arith.subf %76, %79 : vector<4x8x8xf32>
    %81 = math.exp %80 : vector<4x8x8xf32>
    %cst_25 = arith.constant dense<0.000000e+00> : vector<4x8xf32>
    %82 = vector.multi_reduction <add>, %81, %cst_25 [2] : vector<4x8x8xf32> to vector<4x8xf32>
    %83 = vector.shape_cast %82 : vector<4x8xf32> to vector<4x8x1xf32>
    %84 = vector.broadcast %83 : vector<4x8x1xf32> to vector<4x8x8xf32>
    %85 = arith.divf %81, %84 : vector<4x8x8xf32>
    %cst_26 = arith.constant dense<0.000000e+00> : vector<4x8x8xf32>
    %86 = tpu.matmul %85, %71, %cst_26 {dimension_numbers = #tpu.dot_dimension_numbers<[2], [1], [1], [2], [0, 0, 0, 1, 1, 2], [0], [0]>} : vector<4x8x8xf32>, vector<4x8x8xf32>, vector<4x8x8xf32> -> vector<4x8x8xf32>
    %87 = vector.extract_strided_slice %86 {offsets = [0, 0, 0], sizes = [1, 8, 8], strides = [1, 1, 1]} : vector<4x8x8xf32> to vector<1x8x8xf32>
    %88 = vector.shape_cast %87 : vector<1x8x8xf32> to vector<8x8xf32>
    %89 = vector.extract_strided_slice %86 {offsets = [1, 0, 0], sizes = [1, 8, 8], strides = [1, 1, 1]} : vector<4x8x8xf32> to vector<1x8x8xf32>
    %90 = vector.shape_cast %89 : vector<1x8x8xf32> to vector<8x8xf32>
    %91 = vector.extract_strided_slice %86 {offsets = [2, 0, 0], sizes = [1, 8, 8], strides = [1, 1, 1]} : vector<4x8x8xf32> to vector<1x8x8xf32>
    %92 = vector.shape_cast %91 : vector<1x8x8xf32> to vector<8x8xf32>
    %93 = vector.extract_strided_slice %86 {offsets = [3, 0, 0], sizes = [1, 8, 8], strides = [1, 1, 1]} : vector<4x8x8xf32> to vector<1x8x8xf32>
    %94 = vector.shape_cast %93 : vector<1x8x8xf32> to vector<8x8xf32>
    %95 = tpu.concatenate %88, %90, %92, %94 in 1 : vector<8x8xf32>, vector<8x8xf32>, vector<8x8xf32>, vector<8x8xf32> -> vector<8x32xf32>
    %cst_27 = arith.constant dense<0.000000e+00> : vector<8x32xf32>
    %96 = tpu.matmul %95, %1, %cst_27 {dimension_numbers = #tpu.dot_dimension_numbers<[1], [0], [0], [1], [0, 0, 1, 1], [], []>} : vector<8x32xf32>, vector<32x32xf32>, vector<8x32xf32> -> vector<8x32xf32>
    %97 = vector.broadcast %4 : vector<1x32xf32> to vector<8x32xf32>
    %98 = arith.addf %96, %97 : vector<8x32xf32>
    %c1_28 = arith.constant 1 : index
    %c0_29 = arith.constant 0 : index
    %c0_30 = arith.constant 0 : index
    %99 = vector.load %arg5[%c1_28, %c0_29, %c0_30] : memref<2x8x32xf32, #tpu.memory_space<vmem>>, vector<1x8x32xf32>
    %100 = vector.shape_cast %99 : vector<1x8x32xf32> to vector<8x32xf32>
    %101 = vector.shape_cast %98 : vector<8x32xf32> to vector<1x8x32xf32>
    tpu.vector_store %arg5[%c1_28, %c0_29, %c0_30], %101 {strides = array<i32>} : memref<2x8x32xf32, #tpu.memory_space<vmem>>, vector<1x8x32xf32>,
    return
  }
  func.func @transform_0(%arg0: i32) -> (i32, i32, i32) {
    %c0_i32 = arith.constant 0 : i32
    %c0_i32_0 = arith.constant 0 : i32
    %c0_i32_1 = arith.constant 0 : i32
    return %arg0, %c0_i32, %c0_i32_0 : i32, i32, i32
  }
  func.func @transform_1(%arg0: i32) -> (i32, i32) {
    %c0_i32 = arith.constant 0 : i32
    %c0_i32_0 = arith.constant 0 : i32
    %c0_i32_1 = arith.constant 0 : i32
    return %c0_i32, %c0_i32_0 : i32, i32
  }
  func.func @transform_2(%arg0: i32) -> (i32, i32) {
    %c0_i32 = arith.constant 0 : i32
    %c0_i32_0 = arith.constant 0 : i32
    %c0_i32_1 = arith.constant 0 : i32
    return %c0_i32, %c0_i32_0 : i32, i32
  }
  func.func @transform_3(%arg0: i32) -> (i32, i32) {
    %c0_i32 = arith.constant 0 : i32
    %c0_i32_0 = arith.constant 0 : i32
    %c0_i32_1 = arith.constant 0 : i32
    return %c0_i32, %c0_i32_0 : i32, i32
  }
  func.func @transform_4(%arg0: i32) -> (i32, i32, i32) {
    %c0_i32 = arith.constant 0 : i32
    %c0_i32_0 = arith.constant 0 : i32
    %c0_i32_1 = arith.constant 0 : i32
    return %arg0, %c0_i32, %c0_i32_0 : i32, i32, i32
  }
}

</mosaic_0001>

<llo_original>
// kernel: tpu_custom_call.1
$region0: #{tpu_custom_call.1}
  #allocation0 [shape = 'u32[]', space=smem, size = 0x4, offset = 0x4, fixed_abs, tag = 'smem constant byte address 0x4 - core index']
  #allocation1 [shape = 'u32[144,128]{1,0:T(1,128)}', space=vmem, size = 0x12000, scoped, tag = 'internal scratch']
  %s0 = inlined_call_operand.hbm [shape: f32[2,8,32], index: 0, kind: input, shape index: {}]
  %s1 = inlined_call_operand.hbm [shape: f32[32,96], index: 1, kind: input, shape index: {}]
  %s2 = inlined_call_operand.hbm [shape: f32[32,32], index: 2, kind: input, shape index: {}]
  %s3 = inlined_call_operand.vmem [shape: f32[1,128], index: 3, kind: input, shape index: {}]
  %s4 = inlined_call_operand.hbm [shape: f32[2,8,32], index: 4, kind: output, shape index: {}]
  %s5 = sld [smem:[#allocation0]]
  $region38: #{tpu_custom_call.1} parent=0
    _
  %s7 = ssub.s32 1, %s5
  %s8 = scalar_select 0, %s7, %s5
  $region1: #{tpu_custom_call.1} parent=0
    #allocation2 [shape = 'u8[8192]{0}', space=vmem, size = 0x2000, scoped, tag = 'input window, operand 0, single buffered']
    #allocation3 [shape = 's32[1]{0}', space=sflag, size = 0x4, scoped, tag = 'scoped memory for tpu_custom_call.1']
    #allocation4 [shape = 's32[1]{0}', space=sflag, size = 0x4, scoped, tag = 'scoped memory for tpu_custom_call.1']
    #allocation5 [shape = 'u8[16384]{0}', space=vmem, size = 0x4000, scoped, tag = 'input window, operand 1, single buffered']
    #allocation6 [shape = 's32[1]{0}', space=sflag, size = 0x4, scoped, tag = 'scoped memory for tpu_custom_call.1']
    #allocation7 [shape = 'u8[16384]{0}', space=vmem, size = 0x4000, scoped, tag = 'input window, operand 2, single buffered']
    #allocation8 [shape = 'u8[8192]{0}', space=vmem, size = 0x2000, scoped, tag = 'output window, operand 0, single buffered']
    %9 = vsyncpa [#allocation3], 0
    %10 = vsyncpa [#allocation6], 0
    %11 = vsyncpa [#allocation4], 0
    // Predicated region
    $region2: #{tpu_custom_call.1} parent=1 // pred_check
      _
    $region3: #{tpu_custom_call.1} parent=1 // pred_check_branch
      %13 = sbr.rel (0) target = $region5
    $region4: #{tpu_custom_call.1} parent=1 // pred_region
      %s15 = ssub.s32 256, 256
      %16 = vsyncadd [#allocation3], %s15
      %s17 = sshll.u32 [#allocation2], 4
      %s18 = int_to_ptr.vmem [resolvable:$true] %s17
      %23 = dma.hbm_to_vmem [thread:$0]  %s0, 256, %s18, [#allocation3], 128, 128, 8
    $region5: #{tpu_custom_call.1} parent=1 // pred_fallthru
      _
    // Predicated region
    $region6: #{tpu_custom_call.1} parent=1 // pred_check
      _
    $region7: #{tpu_custom_call.1} parent=1 // pred_check_branch
      %25 = sbr.rel (0) target = $region9
    $region8: #{tpu_custom_call.1} parent=1 // pred_region
      %s27 = ssub.s32 512, 512
      %28 = vsyncadd [#allocation6], %s27
      %s29 = sshll.u32 [#allocation5], 4
      %s30 = int_to_ptr.vmem [resolvable:$true] %s29
      %35 = dma.hbm_to_vmem [thread:$0]  %s1, 512, %s30, [#allocation6], 128, 128, 8
    $region9: #{tpu_custom_call.1} parent=1 // pred_fallthru
      _
    // Predicated region
    $region10: #{tpu_custom_call.1} parent=1 // pred_check
      _
    $region11: #{tpu_custom_call.1} parent=1 // pred_check_branch
      %37 = sbr.rel (0) target = $region13
    $region12: #{tpu_custom_call.1} parent=1 // pred_region
      %s39 = ssub.s32 512, 512
      %40 = vsyncadd [#allocation6], %s39
      %s41 = sshll.u32 [#allocation7], 4
      %s42 = int_to_ptr.vmem [resolvable:$true] %s41
      %47 = dma.hbm_to_vmem [thread:$0]  %s2, 512, %s42, [#allocation6], 128, 128, 8
    $region13: #{tpu_custom_call.1} parent=1 // pred_fallthru
      _
    // Predicated region
    $region14: #{tpu_custom_call.1} parent=1 // pred_check
      _
    $region15: #{tpu_custom_call.1} parent=1 // pred_check_branch
      %49 = sbr.rel (0) target = $region17
    $region16: #{tpu_custom_call.1} parent=1 // pred_region
      _
    $region17: #{tpu_custom_call.1} parent=1 // pred_fallthru
      _
    // Predicated region
    $region18: #{tpu_custom_call.1} parent=1 // pred_check
      _
    $region19: #{tpu_custom_call.1} parent=1 // pred_check_branch
      %51 = sbr.rel (0) target = $region21
    $region20: #{tpu_custom_call.1} parent=1 // pred_region
      %52 = dma.done [#allocation3], 256
    $region21: #{tpu_custom_call.1} parent=1 // pred_fallthru
      _
    // Predicated region
    $region22: #{tpu_custom_call.1} parent=1 // pred_check
      _
    $region23: #{tpu_custom_call.1} parent=1 // pred_check_branch
      %54 = sbr.rel (0) target = $region25
    $region24: #{tpu_custom_call.1} parent=1 // pred_region
      %55 = dma.done [#allocation6], 512
    $region25: #{tpu_custom_call.1} parent=1 // pred_fallthru
      _
    // Predicated region
    $region26: #{tpu_custom_call.1} parent=1 // pred_check
      _
    $region27: #{tpu_custom_call.1} parent=1 // pred_check_branch
      %57 = sbr.rel (0) target = $region29
    $region28: #{tpu_custom_call.1} parent=1 // pred_region
      %58 = dma.done [#allocation6], 512
    $region29: #{tpu_custom_call.1} parent=1 // pred_fallthru
      _
    %v59 = vld [vmem:[#allocation5] sm:$0xff]
    %v60 = vld [vmem:[#allocation5 + $0x8] sm:$0xff]
    %v61 = vld [vmem:[#allocation5 + $0x10] sm:$0xff]
    %v62 = vld [vmem:[#allocation5 + $0x18] sm:$0xff]
    %v63 = vld [vmem:[#allocation7] sm:$0xff]
    %v64 = vld [vmem:[#allocation7 + $0x8] sm:$0xff]
    %v65 = vld [vmem:[#allocation7 + $0x10] sm:$0xff]
    %v66 = vld [vmem:[#allocation7 + $0x18] sm:$0xff]
    %v67 = vld [vmem:[%s3] sm:$0x1]
    %v68 = vlaneseq
    %v69 = vshrl.u32 %v68, 7
    %v70 = vlaneseq
    %v71 = vand.u32 %v70, 127
    %vm72 = vcmp.le.s32.totalorder %v71, %v69
    %v73 = vld [vmem:[#allocation2] sm:$0xff]
    %v75 = vlaneseq
    %v76 = vshrl.u32 %v75, 7
    %v77 = vsub.s32 0, %v76
    %v78 = vrot.slane %v67, %v77
    %vm80 = vcmask 261120
    %v82 = vsel %vm80, %v73, 0
    %84 = vmatprep.subr.mxu0 0.0
    %85 = vmatpush1.msra.mxu0 %v59
    %86 = vmatprep.subr.mxu0 0.0
    %87 = vmatpush1.msra.mxu0 %v60
    %88 = vmatprep.subr.mxu0 0.0
    %89 = vmatpush1.msra.mxu0 %v61
    %90 = vmatprep.subr.mxu0 0.0
    %91 = vmatpush1.msra.mxu0 %v62
    %92 = vmatprep.subr.mxu0 0.0
    %93 = vmatpush1.msra.mxu0 0.0
    %94 = vmatprep.subr.mxu0 0.0
    %95 = vmatpush1.msra.mxu0 0.0
    %96 = vmatprep.subr.mxu0 0.0
    %97 = vmatpush1.msra.mxu0 0.0
    %98 = vmatprep.subr.mxu0 0.0
    %99 = vmatpush1.msra.mxu0 0.0
    %100 = vmatprep.subr.mxu0 0.0
    %101 = vmatpush1.msra.mxu0 0.0
    %102 = vmatprep.subr.mxu0 0.0
    %103 = vmatpush1.msra.mxu0 0.0
    %104 = vmatprep.subr.mxu0 0.0
    %105 = vmatpush1.msra.mxu0 0.0
    %106 = vmatprep.subr.mxu0 0.0
    %107 = vmatpush1.msra.mxu0 0.0
    %108 = vmatprep.subr.mxu0 0.0
    %109 = vmatpush1.msra.mxu0 0.0
    %110 = vmatprep.subr.mxu0 0.0
    %111 = vmatpush1.msra.mxu0 0.0
    %112 = vmatprep.subr.mxu0 0.0
    %113 = vmatpush1.msra.mxu0 0.0
    %114 = vmatprep.subr.mxu0 0.0
    %115 = vmatpush1.msra.mxu0 0.0
    %116 = vmatprep.subr.mxu0 0.0
    %117 = vmatpush1.msra.mxu0 0.0
    %118 = vmatprep.subr.mxu0 0.0
    %119 = vmatpush1.msra.mxu0 0.0
    %120 = vmatprep.subr.mxu0 0.0
    %121 = vmatpush1.msra.mxu0 0.0
    %122 = vmatprep.subr.mxu0 0.0
    %123 = vmatpush1.msra.mxu0 0.0
    %124 = vmatprep.subr.mxu0 0.0
    %125 = vmatpush1.msra.mxu0 0.0
    %126 = vmatprep.subr.mxu0 0.0
    %127 = vmatpush1.msra.mxu0 0.0
    %128 = vmatprep.subr.mxu0 0.0
    %129 = vmatpush1.msra.mxu0 0.0
    %130 = vmatprep.subr.mxu0 0.0
    %131 = vmatpush1.msra.mxu0 0.0
    %132 = vmatprep.subr.mxu0 0.0
    %133 = vmatpush1.msra.mxu0 0.0
    %134 = vmatprep.subr.mxu0 0.0
    %135 = vmatpush1.msra.mxu0 0.0
    %136 = vmatprep.subr.mxu0 0.0
    %137 = vmatpush1.msra.mxu0 0.0
    %138 = vmatprep.subr.mxu0 0.0
    %139 = vmatpush1.msra.mxu0 0.0
    %140 = vmatprep.subr.mxu0 0.0
    %141 = vmatpush1.msra.mxu0 0.0
    %142 = vmatprep.subr.mxu0 0.0
    %143 = vmatpush1.msra.mxu0 0.0
    %144 = vmatprep.subr.mxu0 0.0
    %145 = vmatpush1.msra.mxu0 0.0
    %146 = vmatprep.subr.mxu0 0.0
    %147 = vmatpush1.msra.mxu0 0.0
    %148 = vmatprep.mubr.f32.mxu0 0.0
    %149 = vmatmul.mubr.f32.gmra.mrb[0].mxu0 %v82
    %v150 = vpop.f32.mrb[0].mxu0
    %v151 = vadd.f32 %v78, %v150
    %v152 = vpop.f32.mrb[0].mxu0
    %153 = vdwg.mxu0
    %155 = vrot.lane.b32.xlu0 %v151, 104
    %v156 = vpop.permute.xlu0 %155
    %157 = vrot.lane.b32.xlu0 %v151, 80
    %v158 = vpop.permute.xlu0 %157
    %159 = vrot.lane.b32.xlu0 %v151, 56
    %v160 = vpop.permute.xlu0 %159
    %161 = vrot.lane.b32.xlu0 %v151, 120
    %v162 = vpop.permute.xlu0 %161
    %vm163 = vcmask 64512
    %v164 = vsel %vm163, %v151, 0
    %v166 = vsel %vm163, %v162, 0
    %168 = vmatprep.subr.mxu0 0.0
    %169 = vmatpush1.xpose.msra.mxu0 %v166
    %170 = vmatprep.subr.mxu0 0.0
    %171 = vmatpush1.xpose.msra.mxu0 0.0
    %172 = vmatprep.subr.mxu0 0.0
    %173 = vmatpush1.xpose.msra.mxu0 0.0
    %174 = vmatprep.subr.mxu0 0.0
    %175 = vmatpush1.xpose.msra.mxu0 0.0
    %176 = vmatprep.subr.mxu0 0.0
    %177 = vmatpush1.xpose.msra.mxu0 0.0
    %178 = vmatprep.subr.mxu0 0.0
    %179 = vmatpush1.xpose.msra.mxu0 0.0
    %180 = vmatprep.subr.mxu0 0.0
    %181 = vmatpush1.xpose.msra.mxu0 0.0
    %182 = vmatprep.subr.mxu0 0.0
    %183 = vmatpush1.xpose.msra.mxu0 0.0
    %184 = vmatprep.subr.mxu0 0.0
    %185 = vmatpush1.xpose.msra.mxu0 0.0
    %186 = vmatprep.subr.mxu0 0.0
    %187 = vmatpush1.xpose.msra.mxu0 0.0
    %188 = vmatprep.subr.mxu0 0.0
    %189 = vmatpush1.xpose.msra.mxu0 0.0
    %190 = vmatprep.subr.mxu0 0.0
    %191 = vmatpush1.xpose.msra.mxu0 0.0
    %192 = vmatprep.subr.mxu0 0.0
    %193 = vmatpush1.xpose.msra.mxu0 0.0
    %194 = vmatprep.subr.mxu0 0.0
    %195 = vmatpush1.xpose.msra.mxu0 0.0
    %196 = vmatprep.subr.mxu0 0.0
    %197 = vmatpush1.xpose.msra.mxu0 0.0
    %198 = vmatprep.subr.mxu0 0.0
    %199 = vmatpush1.xpose.msra.mxu0 0.0
    %200 = vmatprep.subr.mxu0 0.0
    %201 = vmatpush1.xpose.msra.mxu0 0.0
    %202 = vmatprep.subr.mxu0 0.0
    %203 = vmatpush1.xpose.msra.mxu0 0.0
    %204 = vmatprep.subr.mxu0 0.0
    %205 = vmatpush1.xpose.msra.mxu0 0.0
    %206 = vmatprep.subr.mxu0 0.0
    %207 = vmatpush1.xpose.msra.mxu0 0.0
    %208 = vmatprep.subr.mxu0 0.0
    %209 = vmatpush1.xpose.msra.mxu0 0.0
    %210 = vmatprep.subr.mxu0 0.0
    %211 = vmatpush1.xpose.msra.mxu0 0.0
    %212 = vmatprep.subr.mxu0 0.0
    %213 = vmatpush1.xpose.msra.mxu0 0.0
    %214 = vmatprep.subr.mxu0 0.0
    %215 = vmatpush1.xpose.msra.mxu0 0.0
    %216 = vmatprep.subr.mxu0 0.0
    %217 = vmatpush1.xpose.msra.mxu0 0.0
    %218 = vmatprep.subr.mxu0 0.0
    %219 = vmatpush1.xpose.msra.mxu0 0.0
    %220 = vmatprep.subr.mxu0 0.0
    %221 = vmatpush1.xpose.msra.mxu0 0.0
    %222 = vmatprep.subr.mxu0 0.0
    %223 = vmatpush1.xpose.msra.mxu0 0.0
    %224 = vmatprep.subr.mxu0 0.0
    %225 = vmatpush1.xpose.msra.mxu0 0.0
    %226 = vmatprep.subr.mxu0 0.0
    %227 = vmatpush1.xpose.msra.mxu0 0.0
    %228 = vmatprep.subr.mxu0 0.0
    %229 = vmatpush1.xpose.msra.mxu0 0.0
    %230 = vmatprep.subr.mxu0 0.0
    %231 = vmatpush1.xpose.msra.mxu0 0.0
    %232 = vmatprep.mubr.f32.mxu0 0.0
    %233 = vmatmul.mubr.f32.gmra.mrb[0].mxu0 %v164
    %v234 = vpop.f32.mrb[0].mxu0
    %v235 = vadd.f32 0.0, %v234
    %v236 = vpop.f32.mrb[0].mxu0
    %237 = vdwg.mxu0
    %238 = vrot.lane.b32.xlu0 %v156, 120
    %v239 = vpop.permute.xlu0 %238
    %v240 = vsel %vm163, %v156, 0
    %v242 = vsel %vm163, %v239, 0
    %244 = vmatprep.subr.mxu0 0.0
    %245 = vmatpush1.xpose.msra.mxu0 %v242
    %246 = vmatprep.subr.mxu0 0.0
    %247 = vmatpush1.xpose.msra.mxu0 0.0
    %248 = vmatprep.subr.mxu0 0.0
    %249 = vmatpush1.xpose.msra.mxu0 0.0
    %250 = vmatprep.subr.mxu0 0.0
    %251 = vmatpush1.xpose.msra.mxu0 0.0
    %252 = vmatprep.subr.mxu0 0.0
    %253 = vmatpush1.xpose.msra.mxu0 0.0
    %254 = vmatprep.subr.mxu0 0.0
    %255 = vmatpush1.xpose.msra.mxu0 0.0
    %256 = vmatprep.subr.mxu0 0.0
    %257 = vmatpush1.xpose.msra.mxu0 0.0
    %258 = vmatprep.subr.mxu0 0.0
    %259 = vmatpush1.xpose.msra.mxu0 0.0
    %260 = vmatprep.subr.mxu0 0.0
    %261 = vmatpush1.xpose.msra.mxu0 0.0
    %262 = vmatprep.subr.mxu0 0.0
    %263 = vmatpush1.xpose.msra.mxu0 0.0
    %264 = vmatprep.subr.mxu0 0.0
    %265 = vmatpush1.xpose.msra.mxu0 0.0
    %266 = vmatprep.subr.mxu0 0.0
    %267 = vmatpush1.xpose.msra.mxu0 0.0
    %268 = vmatprep.subr.mxu0 0.0
    %269 = vmatpush1.xpose.msra.mxu0 0.0
    %270 = vmatprep.subr.mxu0 0.0
    %271 = vmatpush1.xpose.msra.mxu0 0.0
    %272 = vmatprep.subr.mxu0 0.0
    %273 = vmatpush1.xpose.msra.mxu0 0.0
    %274 = vmatprep.subr.mxu0 0.0
    %275 = vmatpush1.xpose.msra.mxu0 0.0
    %276 = vmatprep.subr.mxu0 0.0
    %277 = vmatpush1.xpose.msra.mxu0 0.0
    %278 = vmatprep.subr.mxu0 0.0
    %279 = vmatpush1.xpose.msra.mxu0 0.0
    %280 = vmatprep.subr.mxu0 0.0
    %281 = vmatpush1.xpose.msra.mxu0 0.0
    %282 = vmatprep.subr.mxu0 0.0
    %283 = vmatpush1.xpose.msra.mxu0 0.0
    %284 = vmatprep.subr.mxu0 0.0
    %285 = vmatpush1.xpose.msra.mxu0 0.0
    %286 = vmatprep.subr.mxu0 0.0
    %287 = vmatpush1.xpose.msra.mxu0 0.0
    %288 = vmatprep.subr.mxu0 0.0
    %289 = vmatpush1.xpose.msra.mxu0 0.0
    %290 = vmatprep.subr.mxu0 0.0
    %291 = vmatpush1.xpose.msra.mxu0 0.0
    %292 = vmatprep.subr.mxu0 0.0
    %293 = vmatpush1.xpose.msra.mxu0 0.0
    %294 = vmatprep.subr.mxu0 0.0
    %295 = vmatpush1.xpose.msra.mxu0 0.0
    %296 = vmatprep.subr.mxu0 0.0
    %297 = vmatpush1.xpose.msra.mxu0 0.0
    %298 = vmatprep.subr.mxu0 0.0
    %299 = vmatpush1.xpose.msra.mxu0 0.0
    %300 = vmatprep.subr.mxu0 0.0
    %301 = vmatpush1.xpose.msra.mxu0 0.0
    %302 = vmatprep.subr.mxu0 0.0
    %303 = vmatpush1.xpose.msra.mxu0 0.0
    %304 = vmatprep.subr.mxu0 0.0
    %305 = vmatpush1.xpose.msra.mxu0 0.0
    %306 = vmatprep.subr.mxu0 0.0
    %307 = vmatpush1.xpose.msra.mxu0 0.0
    %308 = vmatprep.mubr.f32.mxu0 0.0
    %309 = vmatmul.mubr.f32.gmra.mrb[0].mxu0 %v240
    %v310 = vpop.f32.mrb[0].mxu0
    %v311 = vadd.f32 0.0, %v310
    %v312 = vpop.f32.mrb[0].mxu0
    %313 = vdwg.mxu0
    %314 = vrot.lane.b32.xlu0 %v158, 120
    %v315 = vpop.permute.xlu0 %314
    %v316 = vsel %vm163, %v158, 0
    %v318 = vsel %vm163, %v315, 0
    %320 = vmatprep.subr.mxu0 0.0
    %321 = vmatpush1.xpose.msra.mxu0 %v318
    %322 = vmatprep.subr.mxu0 0.0
    %323 = vmatpush1.xpose.msra.mxu0 0.0
    %324 = vmatprep.subr.mxu0 0.0
    %325 = vmatpush1.xpose.msra.mxu0 0.0
    %326 = vmatprep.subr.mxu0 0.0
    %327 = vmatpush1.xpose.msra.mxu0 0.0
    %328 = vmatprep.subr.mxu0 0.0
    %329 = vmatpush1.xpose.msra.mxu0 0.0
    %330 = vmatprep.subr.mxu0 0.0
    %331 = vmatpush1.xpose.msra.mxu0 0.0
    %332 = vmatprep.subr.mxu0 0.0
    %333 = vmatpush1.xpose.msra.mxu0 0.0
    %334 = vmatprep.subr.mxu0 0.0
    %335 = vmatpush1.xpose.msra.mxu0 0.0
    %336 = vmatprep.subr.mxu0 0.0
    %337 = vmatpush1.xpose.msra.mxu0 0.0
    %338 = vmatprep.subr.mxu0 0.0
    %339 = vmatpush1.xpose.msra.mxu0 0.0
    %340 = vmatprep.subr.mxu0 0.0
    %341 = vmatpush1.xpose.msra.mxu0 0.0
    %342 = vmatprep.subr.mxu0 0.0
    %343 = vmatpush1.xpose.msra.mxu0 0.0
    %344 = vmatprep.subr.mxu0 0.0
    %345 = vmatpush1.xpose.msra.mxu0 0.0
    %346 = vmatprep.subr.mxu0 0.0
    %347 = vmatpush1.xpose.msra.mxu0 0.0
    %348 = vmatprep.subr.mxu0 0.0
    %349 = vmatpush1.xpose.msra.mxu0 0.0
    %350 = vmatprep.subr.mxu0 0.0
    %351 = vmatpush1.xpose.msra.mxu0 0.0
    %352 = vmatprep.subr.mxu0 0.0
    %353 = vmatpush1.xpose.msra.mxu0 0.0
    %354 = vmatprep.subr.mxu0 0.0
    %355 = vmatpush1.xpose.msra.mxu0 0.0
    %356 = vmatprep.subr.mxu0 0.0
    %357 = vmatpush1.xpose.msra.mxu0 0.0
    %358 = vmatprep.subr.mxu0 0.0
    %359 = vmatpush1.xpose.msra.mxu0 0.0
    %360 = vmatprep.subr.mxu0 0.0
    %361 = vmatpush1.xpose.msra.mxu0 0.0
    %362 = vmatprep.subr.mxu0 0.0
    %363 = vmatpush1.xpose.msra.mxu0 0.0
    %364 = vmatprep.subr.mxu0 0.0
    %365 = vmatpush1.xpose.msra.mxu0 0.0
    %366 = vmatprep.subr.mxu0 0.0
    %367 = vmatpush1.xpose.msra.mxu0 0.0
    %368 = vmatprep.subr.mxu0 0.0
    %369 = vmatpush1.xpose.msra.mxu0 0.0
    %370 = vmatprep.subr.mxu0 0.0
    %371 = vmatpush1.xpose.msra.mxu0 0.0
    %372 = vmatprep.subr.mxu0 0.0
    %373 = vmatpush1.xpose.msra.mxu0 0.0
    %374 = vmatprep.subr.mxu0 0.0
    %375 = vmatpush1.xpose.msra.mxu0 0.0
    %376 = vmatprep.subr.mxu0 0.0
    %377 = vmatpush1.xpose.msra.mxu0 0.0
    %378 = vmatprep.subr.mxu0 0.0
    %379 = vmatpush1.xpose.msra.mxu0 0.0
    %380 = vmatprep.subr.mxu0 0.0
    %381 = vmatpush1.xpose.msra.mxu0 0.0
    %382 = vmatprep.subr.mxu0 0.0
    %383 = vmatpush1.xpose.msra.mxu0 0.0
    %384 = vmatprep.mubr.f32.mxu0 0.0
    %385 = vmatmul.mubr.f32.gmra.mrb[0].mxu0 %v316
    %v386 = vpop.f32.mrb[0].mxu0
    %v387 = vadd.f32 0.0, %v386
    %v388 = vpop.f32.mrb[0].mxu0
    %389 = vdwg.mxu0
    %390 = vrot.lane.b32.xlu0 %v160, 120
    %v391 = vpop.permute.xlu0 %390
    %v392 = vsel %vm163, %v160, 0
    %v394 = vsel %vm163, %v391, 0
    %396 = vmatprep.subr.mxu0 0.0
    %397 = vmatpush1.xpose.msra.mxu0 %v394
    %398 = vmatprep.subr.mxu0 0.0
    %399 = vmatpush1.xpose.msra.mxu0 0.0
    %400 = vmatprep.subr.mxu0 0.0
    %401 = vmatpush1.xpose.msra.mxu0 0.0
    %402 = vmatprep.subr.mxu0 0.0
    %403 = vmatpush1.xpose.msra.mxu0 0.0
    %404 = vmatprep.subr.mxu0 0.0
    %405 = vmatpush1.xpose.msra.mxu0 0.0
    %406 = vmatprep.subr.mxu0 0.0
    %407 = vmatpush1.xpose.msra.mxu0 0.0
    %408 = vmatprep.subr.mxu0 0.0
    %409 = vmatpush1.xpose.msra.mxu0 0.0
    %410 = vmatprep.subr.mxu0 0.0
    %411 = vmatpush1.xpose.msra.mxu0 0.0
    %412 = vmatprep.subr.mxu0 0.0
    %413 = vmatpush1.xpose.msra.mxu0 0.0
    %414 = vmatprep.subr.mxu0 0.0
    %415 = vmatpush1.xpose.msra.mxu0 0.0
    %416 = vmatprep.subr.mxu0 0.0
    %417 = vmatpush1.xpose.msra.mxu0 0.0
    %418 = vmatprep.subr.mxu0 0.0
    %419 = vmatpush1.xpose.msra.mxu0 0.0
    %420 = vmatprep.subr.mxu0 0.0
    %421 = vmatpush1.xpose.msra.mxu0 0.0
    %422 = vmatprep.subr.mxu0 0.0
    %423 = vmatpush1.xpose.msra.mxu0 0.0
    %424 = vmatprep.subr.mxu0 0.0
    %425 = vmatpush1.xpose.msra.mxu0 0.0
    %426 = vmatprep.subr.mxu0 0.0
    %427 = vmatpush1.xpose.msra.mxu0 0.0
    %428 = vmatprep.subr.mxu0 0.0
    %429 = vmatpush1.xpose.msra.mxu0 0.0
    %430 = vmatprep.subr.mxu0 0.0
    %431 = vmatpush1.xpose.msra.mxu0 0.0
    %432 = vmatprep.subr.mxu0 0.0
    %433 = vmatpush1.xpose.msra.mxu0 0.0
    %434 = vmatprep.subr.mxu0 0.0
    %435 = vmatpush1.xpose.msra.mxu0 0.0
    %436 = vmatprep.subr.mxu0 0.0
    %437 = vmatpush1.xpose.msra.mxu0 0.0
    %438 = vmatprep.subr.mxu0 0.0
    %439 = vmatpush1.xpose.msra.mxu0 0.0
    %440 = vmatprep.subr.mxu0 0.0
    %441 = vmatpush1.xpose.msra.mxu0 0.0
    %442 = vmatprep.subr.mxu0 0.0
    %443 = vmatpush1.xpose.msra.mxu0 0.0
    %444 = vmatprep.subr.mxu0 0.0
    %445 = vmatpush1.xpose.msra.mxu0 0.0
    %446 = vmatprep.subr.mxu0 0.0
    %447 = vmatpush1.xpose.msra.mxu0 0.0
    %448 = vmatprep.subr.mxu0 0.0
    %449 = vmatpush1.xpose.msra.mxu0 0.0
    %450 = vmatprep.subr.mxu0 0.0
    %451 = vmatpush1.xpose.msra.mxu0 0.0
    %452 = vmatprep.subr.mxu0 0.0
    %453 = vmatpush1.xpose.msra.mxu0 0.0
    %454 = vmatprep.subr.mxu0 0.0
    %455 = vmatpush1.xpose.msra.mxu0 0.0
    %456 = vmatprep.subr.mxu0 0.0
    %457 = vmatpush1.xpose.msra.mxu0 0.0
    %458 = vmatprep.subr.mxu0 0.0
    %459 = vmatpush1.xpose.msra.mxu0 0.0
    %460 = vmatprep.mubr.f32.mxu0 0.0
    %461 = vmatmul.mubr.f32.gmra.mrb[0].mxu0 %v392
    %v462 = vpop.f32.mrb[0].mxu0
    %v463 = vadd.f32 0.0, %v462
    %v464 = vpop.f32.mrb[0].mxu0
    %465 = vdwg.mxu0
    %v466 = vmul.f32 %v235, 0.35355338
    %v467 = vmul.f32 %v311, 0.35355338
    %v468 = vmul.f32 %v387, 0.35355338
    %v469 = vmul.f32 %v463, 0.35355338
    %v470 = vsel %vm72, %v466, -inf
    %v471 = vsel %vm72, %v467, -inf
    %v472 = vsel %vm72, %v468, -inf
    %v473 = vsel %vm72, %v469, -inf
    %v474 = vsel %vm163, %v470, -inf
    %475 = vmax.xlane.f32.xlu0 %v474
    %v476 = vpop.xlane.xlu0 %475
    %v477 = vsel %vm163, %v471, -inf
    %478 = vmax.xlane.f32.xlu0 %v477
    %v479 = vpop.xlane.xlu0 %478
    %v480 = vsel %vm163, %v472, -inf
    %481 = vmax.xlane.f32.xlu0 %v480
    %v482 = vpop.xlane.xlu0 %481
    %v483 = vsel %vm163, %v473, -inf
    %484 = vmax.xlane.f32.xlu0 %v483
    %v485 = vpop.xlane.xlu0 %484
    %v486 = vsub.f32 %v470, %v476
    %v487 = vsub.f32 %v471, %v479
    %v488 = vsub.f32 %v472, %v482
    %v489 = vsub.f32 %v473, %v485
    %v490 = vmul.f32 %v486, 1.442695
    %v491 = vpow.pop %v490
    %v492 = vmul.f32 %v487, 1.442695
    %v493 = vpow.pop %v492
    %v494 = vmul.f32 %v488, 1.442695
    %v495 = vpow.pop %v494
    %v496 = vmul.f32 %v489, 1.442695
    %v497 = vpow.pop %v496
    %v498 = vsel %vm163, %v491, 0.0
    %499 = vadd.xlane.f32.xlu0 %v498
    %v500 = vpop.xlane.xlu0 %499
    %v501 = vsel %vm163, %v493, 0.0
    %502 = vadd.xlane.f32.xlu0 %v501
    %v503 = vpop.xlane.xlu0 %502
    %v504 = vsel %vm163, %v495, 0.0
    %505 = vadd.xlane.f32.xlu0 %v504
    %v506 = vpop.xlane.xlu0 %505
    %v507 = vsel %vm163, %v497, 0.0
    %508 = vadd.xlane.f32.xlu0 %v507
    %v509 = vpop.xlane.xlu0 %508
    %v510 = vrcp.pop %v500
    %v511 = vmul.f32 %v491, %v510
    %v512 = vrcp.pop %v503
    %v513 = vmul.f32 %v493, %v512
    %v514 = vrcp.pop %v506
    %v515 = vmul.f32 %v495, %v514
    %v516 = vrcp.pop %v509
    %v517 = vmul.f32 %v497, %v516
    %518 = vrot.lane.b32.xlu0 %v151, 112
    %v519 = vpop.permute.xlu0 %518
    %v522 = vsel %vm163, %v511, 0
    %524 = vmatprep.subr.mxu0 0.0
    %525 = vmatpush1.msra.mxu0 %v519
    %526 = vmatprep.subr.mxu0 0.0
    %527 = vmatpush1.msra.mxu0 0.0
    %528 = vmatprep.subr.mxu0 0.0
    %529 = vmatpush1.msra.mxu0 0.0
    %530 = vmatprep.subr.mxu0 0.0
    %531 = vmatpush1.msra.mxu0 0.0
    %532 = vmatprep.subr.mxu0 0.0
    %533 = vmatpush1.msra.mxu0 0.0
    %534 = vmatprep.subr.mxu0 0.0
    %535 = vmatpush1.msra.mxu0 0.0
    %536 = vmatprep.subr.mxu0 0.0
    %537 = vmatpush1.msra.mxu0 0.0
    %538 = vmatprep.subr.mxu0 0.0
    %539 = vmatpush1.msra.mxu0 0.0
    %540 = vmatprep.subr.mxu0 0.0
    %541 = vmatpush1.msra.mxu0 0.0
    %542 = vmatprep.subr.mxu0 0.0
    %543 = vmatpush1.msra.mxu0 0.0
    %544 = vmatprep.subr.mxu0 0.0
    %545 = vmatpush1.msra.mxu0 0.0
    %546 = vmatprep.subr.mxu0 0.0
    %547 = vmatpush1.msra.mxu0 0.0
    %548 = vmatprep.subr.mxu0 0.0
    %549 = vmatpush1.msra.mxu0 0.0
    %550 = vmatprep.subr.mxu0 0.0
    %551 = vmatpush1.msra.mxu0 0.0
    %552 = vmatprep.subr.mxu0 0.0
    %553 = vmatpush1.msra.mxu0 0.0
    %554 = vmatprep.subr.mxu0 0.0
    %555 = vmatpush1.msra.mxu0 0.0
    %556 = vmatprep.subr.mxu0 0.0
    %557 = vmatpush1.msra.mxu0 0.0
    %558 = vmatprep.subr.mxu0 0.0
    %559 = vmatpush1.msra.mxu0 0.0
    %560 = vmatprep.subr.mxu0 0.0
    %561 = vmatpush1.msra.mxu0 0.0
    %562 = vmatprep.subr.mxu0 0.0
    %563 = vmatpush1.msra.mxu0 0.0
    %564 = vmatprep.subr.mxu0 0.0
    %565 = vmatpush1.msra.mxu0 0.0
    %566 = vmatprep.subr.mxu0 0.0
    %567 = vmatpush1.msra.mxu0 0.0
    %568 = vmatprep.subr.mxu0 0.0
    %569 = vmatpush1.msra.mxu0 0.0
    %570 = vmatprep.subr.mxu0 0.0
    %571 = vmatpush1.msra.mxu0 0.0
    %572 = vmatprep.subr.mxu0 0.0
    %573 = vmatpush1.msra.mxu0 0.0
    %574 = vmatprep.subr.mxu0 0.0
    %575 = vmatpush1.msra.mxu0 0.0
    %576 = vmatprep.subr.mxu0 0.0
    %577 = vmatpush1.msra.mxu0 0.0
    %578 = vmatprep.subr.mxu0 0.0
    %579 = vmatpush1.msra.mxu0 0.0
    %580 = vmatprep.subr.mxu0 0.0
    %581 = vmatpush1.msra.mxu0 0.0
    %582 = vmatprep.subr.mxu0 0.0
    %583 = vmatpush1.msra.mxu0 0.0
    %584 = vmatprep.subr.mxu0 0.0
    %585 = vmatpush1.msra.mxu0 0.0
    %586 = vmatprep.subr.mxu0 0.0
    %587 = vmatpush1.msra.mxu0 0.0
    %588 = vmatprep.mubr.f32.mxu0 0.0
    %589 = vmatmul.mubr.f32.gmra.mrb[0].mxu0 %v522
    %v590 = vpop.f32.mrb[0].mxu0
    %v591 = vadd.f32 0.0, %v590
    %v592 = vpop.f32.mrb[0].mxu0
    %593 = vdwg.mxu0
    %594 = vrot.lane.b32.xlu0 %v156, 112
    %v595 = vpop.permute.xlu0 %594
    %v598 = vsel %vm163, %v513, 0
    %600 = vmatprep.subr.mxu0 0.0
    %601 = vmatpush1.msra.mxu0 %v595
    %602 = vmatprep.subr.mxu0 0.0
    %603 = vmatpush1.msra.mxu0 0.0
    %604 = vmatprep.subr.mxu0 0.0
    %605 = vmatpush1.msra.mxu0 0.0
    %606 = vmatprep.subr.mxu0 0.0
    %607 = vmatpush1.msra.mxu0 0.0
    %608 = vmatprep.subr.mxu0 0.0
    %609 = vmatpush1.msra.mxu0 0.0
    %610 = vmatprep.subr.mxu0 0.0
    %611 = vmatpush1.msra.mxu0 0.0
    %612 = vmatprep.subr.mxu0 0.0
    %613 = vmatpush1.msra.mxu0 0.0
    %614 = vmatprep.subr.mxu0 0.0
    %615 = vmatpush1.msra.mxu0 0.0
    %616 = vmatprep.subr.mxu0 0.0
    %617 = vmatpush1.msra.mxu0 0.0
    %618 = vmatprep.subr.mxu0 0.0
    %619 = vmatpush1.msra.mxu0 0.0
    %620 = vmatprep.subr.mxu0 0.0
    %621 = vmatpush1.msra.mxu0 0.0
    %622 = vmatprep.subr.mxu0 0.0
    %623 = vmatpush1.msra.mxu0 0.0
    %624 = vmatprep.subr.mxu0 0.0
    %625 = vmatpush1.msra.mxu0 0.0
    %626 = vmatprep.subr.mxu0 0.0
    %627 = vmatpush1.msra.mxu0 0.0
    %628 = vmatprep.subr.mxu0 0.0
    %629 = vmatpush1.msra.mxu0 0.0
    %630 = vmatprep.subr.mxu0 0.0
    %631 = vmatpush1.msra.mxu0 0.0
    %632 = vmatprep.subr.mxu0 0.0
    %633 = vmatpush1.msra.mxu0 0.0
    %634 = vmatprep.subr.mxu0 0.0
    %635 = vmatpush1.msra.mxu0 0.0
    %636 = vmatprep.subr.mxu0 0.0
    %637 = vmatpush1.msra.mxu0 0.0
    %638 = vmatprep.subr.mxu0 0.0
    %639 = vmatpush1.msra.mxu0 0.0
    %640 = vmatprep.subr.mxu0 0.0
    %641 = vmatpush1.msra.mxu0 0.0
    %642 = vmatprep.subr.mxu0 0.0
    %643 = vmatpush1.msra.mxu0 0.0
    %644 = vmatprep.subr.mxu0 0.0
    %645 = vmatpush1.msra.mxu0 0.0
    %646 = vmatprep.subr.mxu0 0.0
    %647 = vmatpush1.msra.mxu0 0.0
    %648 = vmatprep.subr.mxu0 0.0
    %649 = vmatpush1.msra.mxu0 0.0
    %650 = vmatprep.subr.mxu0 0.0
    %651 = vmatpush1.msra.mxu0 0.0
    %652 = vmatprep.subr.mxu0 0.0
    %653 = vmatpush1.msra.mxu0 0.0
    %654 = vmatprep.subr.mxu0 0.0
    %655 = vmatpush1.msra.mxu0 0.0
    %656 = vmatprep.subr.mxu0 0.0
    %657 = vmatpush1.msra.mxu0 0.0
    %658 = vmatprep.subr.mxu0 0.0
    %659 = vmatpush1.msra.mxu0 0.0
    %660 = vmatprep.subr.mxu0 0.0
    %661 = vmatpush1.msra.mxu0 0.0
    %662 = vmatprep.subr.mxu0 0.0
    %663 = vmatpush1.msra.mxu0 0.0
    %664 = vmatprep.mubr.f32.mxu0 0.0
    %665 = vmatmul.mubr.f32.gmra.mrb[0].mxu0 %v598
    %v666 = vpop.f32.mrb[0].mxu0
    %v667 = vadd.f32 0.0, %v666
    %v668 = vpop.f32.mrb[0].mxu0
    %669 = vdwg.mxu0
    %670 = vrot.lane.b32.xlu0 %v158, 112
    %v671 = vpop.permute.xlu0 %670
    %v674 = vsel %vm163, %v515, 0
    %676 = vmatprep.subr.mxu0 0.0
    %677 = vmatpush1.msra.mxu0 %v671
    %678 = vmatprep.subr.mxu0 0.0
    %679 = vmatpush1.msra.mxu0 0.0
    %680 = vmatprep.subr.mxu0 0.0
    %681 = vmatpush1.msra.mxu0 0.0
    %682 = vmatprep.subr.mxu0 0.0
    %683 = vmatpush1.msra.mxu0 0.0
    %684 = vmatprep.subr.mxu0 0.0
    %685 = vmatpush1.msra.mxu0 0.0
    %686 = vmatprep.subr.mxu0 0.0
    %687 = vmatpush1.msra.mxu0 0.0
    %688 = vmatprep.subr.mxu0 0.0
    %689 = vmatpush1.msra.mxu0 0.0
    %690 = vmatprep.subr.mxu0 0.0
    %691 = vmatpush1.msra.mxu0 0.0
    %692 = vmatprep.subr.mxu0 0.0
    %693 = vmatpush1.msra.mxu0 0.0
    %694 = vmatprep.subr.mxu0 0.0
    %695 = vmatpush1.msra.mxu0 0.0
    %696 = vmatprep.subr.mxu0 0.0
    %697 = vmatpush1.msra.mxu0 0.0
    %698 = vmatprep.subr.mxu0 0.0
    %699 = vmatpush1.msra.mxu0 0.0
    %700 = vmatprep.subr.mxu0 0.0
    %701 = vmatpush1.msra.mxu0 0.0
    %702 = vmatprep.subr.mxu0 0.0
    %703 = vmatpush1.msra.mxu0 0.0
    %704 = vmatprep.subr.mxu0 0.0
    %705 = vmatpush1.msra.mxu0 0.0
    %706 = vmatprep.subr.mxu0 0.0
    %707 = vmatpush1.msra.mxu0 0.0
    %708 = vmatprep.subr.mxu0 0.0
    %709 = vmatpush1.msra.mxu0 0.0
    %710 = vmatprep.subr.mxu0 0.0
    %711 = vmatpush1.msra.mxu0 0.0
    %712 = vmatprep.subr.mxu0 0.0
    %713 = vmatpush1.msra.mxu0 0.0
    %714 = vmatprep.subr.mxu0 0.0
    %715 = vmatpush1.msra.mxu0 0.0
    %716 = vmatprep.subr.mxu0 0.0
    %717 = vmatpush1.msra.mxu0 0.0
    %718 = vmatprep.subr.mxu0 0.0
    %719 = vmatpush1.msra.mxu0 0.0
    %720 = vmatprep.subr.mxu0 0.0
    %721 = vmatpush1.msra.mxu0 0.0
    %722 = vmatprep.subr.mxu0 0.0
    %723 = vmatpush1.msra.mxu0 0.0
    %724 = vmatprep.subr.mxu0 0.0
    %725 = vmatpush1.msra.mxu0 0.0
    %726 = vmatprep.subr.mxu0 0.0
    %727 = vmatpush1.msra.mxu0 0.0
    %728 = vmatprep.subr.mxu0 0.0
    %729 = vmatpush1.msra.mxu0 0.0
    %730 = vmatprep.subr.mxu0 0.0
    %731 = vmatpush1.msra.mxu0 0.0
    %732 = vmatprep.subr.mxu0 0.0
    %733 = vmatpush1.msra.mxu0 0.0
    %734 = vmatprep.subr.mxu0 0.0
    %735 = vmatpush1.msra.mxu0 0.0
    %736 = vmatprep.subr.mxu0 0.0
    %737 = vmatpush1.msra.mxu0 0.0
    %738 = vmatprep.subr.mxu0 0.0
    %739 = vmatpush1.msra.mxu0 0.0
    %740 = vmatprep.mubr.f32.mxu0 0.0
    %741 = vmatmul.mubr.f32.gmra.mrb[0].mxu0 %v674
    %v742 = vpop.f32.mrb[0].mxu0
    %v743 = vadd.f32 0.0, %v742
    %v744 = vpop.f32.mrb[0].mxu0
    %745 = vdwg.mxu0
    %746 = vrot.lane.b32.xlu0 %v160, 112
    %v747 = vpop.permute.xlu0 %746
    %v750 = vsel %vm163, %v517, 0
    %752 = vmatprep.subr.mxu0 0.0
    %753 = vmatpush1.msra.mxu0 %v747
    %754 = vmatprep.subr.mxu0 0.0
    %755 = vmatpush1.msra.mxu0 0.0
    %756 = vmatprep.subr.mxu0 0.0
    %757 = vmatpush1.msra.mxu0 0.0
    %758 = vmatprep.subr.mxu0 0.0
    %759 = vmatpush1.msra.mxu0 0.0
    %760 = vmatprep.subr.mxu0 0.0
    %761 = vmatpush1.msra.mxu0 0.0
    %762 = vmatprep.subr.mxu0 0.0
    %763 = vmatpush1.msra.mxu0 0.0
    %764 = vmatprep.subr.mxu0 0.0
    %765 = vmatpush1.msra.mxu0 0.0
    %766 = vmatprep.subr.mxu0 0.0
    %767 = vmatpush1.msra.mxu0 0.0
    %768 = vmatprep.subr.mxu0 0.0
    %769 = vmatpush1.msra.mxu0 0.0
    %770 = vmatprep.subr.mxu0 0.0
    %771 = vmatpush1.msra.mxu0 0.0
    %772 = vmatprep.subr.mxu0 0.0
    %773 = vmatpush1.msra.mxu0 0.0
    %774 = vmatprep.subr.mxu0 0.0
    %775 = vmatpush1.msra.mxu0 0.0
    %776 = vmatprep.subr.mxu0 0.0
    %777 = vmatpush1.msra.mxu0 0.0
    %778 = vmatprep.subr.mxu0 0.0
    %779 = vmatpush1.msra.mxu0 0.0
    %780 = vmatprep.subr.mxu0 0.0
    %781 = vmatpush1.msra.mxu0 0.0
    %782 = vmatprep.subr.mxu0 0.0
    %783 = vmatpush1.msra.mxu0 0.0
    %784 = vmatprep.subr.mxu0 0.0
    %785 = vmatpush1.msra.mxu0 0.0
    %786 = vmatprep.subr.mxu0 0.0
    %787 = vmatpush1.msra.mxu0 0.0
    %788 = vmatprep.subr.mxu0 0.0
    %789 = vmatpush1.msra.mxu0 0.0
    %790 = vmatprep.subr.mxu0 0.0
    %791 = vmatpush1.msra.mxu0 0.0
    %792 = vmatprep.subr.mxu0 0.0
    %793 = vmatpush1.msra.mxu0 0.0
    %794 = vmatprep.subr.mxu0 0.0
    %795 = vmatpush1.msra.mxu0 0.0
    %796 = vmatprep.subr.mxu0 0.0
    %797 = vmatpush1.msra.mxu0 0.0
    %798 = vmatprep.subr.mxu0 0.0
    %799 = vmatpush1.msra.mxu0 0.0
    %800 = vmatprep.subr.mxu0 0.0
    %801 = vmatpush1.msra.mxu0 0.0
    %802 = vmatprep.subr.mxu0 0.0
    %803 = vmatpush1.msra.mxu0 0.0
    %804 = vmatprep.subr.mxu0 0.0
    %805 = vmatpush1.msra.mxu0 0.0
    %806 = vmatprep.subr.mxu0 0.0
    %807 = vmatpush1.msra.mxu0 0.0
    %808 = vmatprep.subr.mxu0 0.0
    %809 = vmatpush1.msra.mxu0 0.0
    %810 = vmatprep.subr.mxu0 0.0
    %811 = vmatpush1.msra.mxu0 0.0
    %812 = vmatprep.subr.mxu0 0.0
    %813 = vmatpush1.msra.mxu0 0.0
    %814 = vmatprep.subr.mxu0 0.0
    %815 = vmatpush1.msra.mxu0 0.0
    %816 = vmatprep.mubr.f32.mxu0 0.0
    %817 = vmatmul.mubr.f32.gmra.mrb[0].mxu0 %v750
    %v818 = vpop.f32.mrb[0].mxu0
    %v819 = vadd.f32 0.0, %v818
    %v820 = vpop.f32.mrb[0].mxu0
    %821 = vdwg.mxu0
    %823 = vrot.lane.b32.xlu0 %v667, 8
    %v824 = vpop.permute.xlu0 %823
    %827 = vrot.lane.b32.xlu0 %v743, 16
    %v828 = vpop.permute.xlu0 %827
    %831 = vrot.lane.b32.xlu0 %v819, 24
    %v832 = vpop.permute.xlu0 %831
    %v834 = vsel %vm163, %v591, %v824
    %vm835 = vcmask 130048
    %v836 = vsel %vm835, %v834, %v828
    %vm837 = vcmask 195584
    %v838 = vsel %vm837, %v836, %v832
    %839 = vrot.lane.b32.xlu0 %v78, 32
    %v840 = vpop.permute.xlu0 %839
    %v843 = vsel %vm80, %v838, 0
    %845 = vmatprep.subr.mxu0 0.0
    %846 = vmatpush1.msra.mxu0 %v63
    %847 = vmatprep.subr.mxu0 0.0
    %848 = vmatpush1.msra.mxu0 %v64
    %849 = vmatprep.subr.mxu0 0.0
    %850 = vmatpush1.msra.mxu0 %v65
    %851 = vmatprep.subr.mxu0 0.0
    %852 = vmatpush1.msra.mxu0 %v66
    %853 = vmatprep.subr.mxu0 0.0
    %854 = vmatpush1.msra.mxu0 0.0
    %855 = vmatprep.subr.mxu0 0.0
    %856 = vmatpush1.msra.mxu0 0.0
    %857 = vmatprep.subr.mxu0 0.0
    %858 = vmatpush1.msra.mxu0 0.0
    %859 = vmatprep.subr.mxu0 0.0
    %860 = vmatpush1.msra.mxu0 0.0
    %861 = vmatprep.subr.mxu0 0.0
    %862 = vmatpush1.msra.mxu0 0.0
    %863 = vmatprep.subr.mxu0 0.0
    %864 = vmatpush1.msra.mxu0 0.0
    %865 = vmatprep.subr.mxu0 0.0
    %866 = vmatpush1.msra.mxu0 0.0
    %867 = vmatprep.subr.mxu0 0.0
    %868 = vmatpush1.msra.mxu0 0.0
    %869 = vmatprep.subr.mxu0 0.0
    %870 = vmatpush1.msra.mxu0 0.0
    %871 = vmatprep.subr.mxu0 0.0
    %872 = vmatpush1.msra.mxu0 0.0
    %873 = vmatprep.subr.mxu0 0.0
    %874 = vmatpush1.msra.mxu0 0.0
    %875 = vmatprep.subr.mxu0 0.0
    %876 = vmatpush1.msra.mxu0 0.0
    %877 = vmatprep.subr.mxu0 0.0
    %878 = vmatpush1.msra.mxu0 0.0
    %879 = vmatprep.subr.mxu0 0.0
    %880 = vmatpush1.msra.mxu0 0.0
    %881 = vmatprep.subr.mxu0 0.0
    %882 = vmatpush1.msra.mxu0 0.0
    %883 = vmatprep.subr.mxu0 0.0
    %884 = vmatpush1.msra.mxu0 0.0
    %885 = vmatprep.subr.mxu0 0.0
    %886 = vmatpush1.msra.mxu0 0.0
    %887 = vmatprep.subr.mxu0 0.0
    %888 = vmatpush1.msra.mxu0 0.0
    %889 = vmatprep.subr.mxu0 0.0
    %890 = vmatpush1.msra.mxu0 0.0
    %891 = vmatprep.subr.mxu0 0.0
    %892 = vmatpush1.msra.mxu0 0.0
    %893 = vmatprep.subr.mxu0 0.0
    %894 = vmatpush1.msra.mxu0 0.0
    %895 = vmatprep.subr.mxu0 0.0
    %896 = vmatpush1.msra.mxu0 0.0
    %897 = vmatprep.subr.mxu0 0.0
    %898 = vmatpush1.msra.mxu0 0.0
    %899 = vmatprep.subr.mxu0 0.0
    %900 = vmatpush1.msra.mxu0 0.0
    %901 = vmatprep.subr.mxu0 0.0
    %902 = vmatpush1.msra.mxu0 0.0
    %903 = vmatprep.subr.mxu0 0.0
    %904 = vmatpush1.msra.mxu0 0.0
    %905 = vmatprep.subr.mxu0 0.0
    %906 = vmatpush1.msra.mxu0 0.0
    %907 = vmatprep.subr.mxu0 0.0
    %908 = vmatpush1.msra.mxu0 0.0
    %909 = vmatprep.mubr.f32.mxu0 0.0
    %910 = vmatmul.mubr.f32.gmra.mrb[0].mxu0 %v843
    %v911 = vpop.f32.mrb[0].mxu0
    %v912 = vadd.f32 %v840, %v911
    %v913 = vpop.f32.mrb[0].mxu0
    %914 = vdwg.mxu0
    %915 = vst.msk [vmem:[#allocation8] sm:$0xff] %vm80, %v912
    %s916 = scalar_lea.vmem [#allocation2], 8
    %v917 = vld [vmem:[%s916] sm:$0xff]
    %v919 = vsel %vm80, %v917, 0
    %921 = vmatprep.subr.mxu0 0.0
    %922 = vmatpush1.msra.mxu0 %v59
    %923 = vmatprep.subr.mxu0 0.0
    %924 = vmatpush1.msra.mxu0 %v60
    %925 = vmatprep.subr.mxu0 0.0
    %926 = vmatpush1.msra.mxu0 %v61
    %927 = vmatprep.subr.mxu0 0.0
    %928 = vmatpush1.msra.mxu0 %v62
    %929 = vmatprep.subr.mxu0 0.0
    %930 = vmatpush1.msra.mxu0 0.0
    %931 = vmatprep.subr.mxu0 0.0
    %932 = vmatpush1.msra.mxu0 0.0
    %933 = vmatprep.subr.mxu0 0.0
    %934 = vmatpush1.msra.mxu0 0.0
    %935 = vmatprep.subr.mxu0 0.0
    %936 = vmatpush1.msra.mxu0 0.0
    %937 = vmatprep.subr.mxu0 0.0
    %938 = vmatpush1.msra.mxu0 0.0
    %939 = vmatprep.subr.mxu0 0.0
    %940 = vmatpush1.msra.mxu0 0.0
    %941 = vmatprep.subr.mxu0 0.0
    %942 = vmatpush1.msra.mxu0 0.0
    %943 = vmatprep.subr.mxu0 0.0
    %944 = vmatpush1.msra.mxu0 0.0
    %945 = vmatprep.subr.mxu0 0.0
    %946 = vmatpush1.msra.mxu0 0.0
    %947 = vmatprep.subr.mxu0 0.0
    %948 = vmatpush1.msra.mxu0 0.0
    %949 = vmatprep.subr.mxu0 0.0
    %950 = vmatpush1.msra.mxu0 0.0
    %951 = vmatprep.subr.mxu0 0.0
    %952 = vmatpush1.msra.mxu0 0.0
    %953 = vmatprep.subr.mxu0 0.0
    %954 = vmatpush1.msra.mxu0 0.0
    %955 = vmatprep.subr.mxu0 0.0
    %956 = vmatpush1.msra.mxu0 0.0
    %957 = vmatprep.subr.mxu0 0.0
    %958 = vmatpush1.msra.mxu0 0.0
    %959 = vmatprep.subr.mxu0 0.0
    %960 = vmatpush1.msra.mxu0 0.0
    %961 = vmatprep.subr.mxu0 0.0
    %962 = vmatpush1.msra.mxu0 0.0
    %963 = vmatprep.subr.mxu0 0.0
    %964 = vmatpush1.msra.mxu0 0.0
    %965 = vmatprep.subr.mxu0 0.0
    %966 = vmatpush1.msra.mxu0 0.0
    %967 = vmatprep.subr.mxu0 0.0
    %968 = vmatpush1.msra.mxu0 0.0
    %969 = vmatprep.subr.mxu0 0.0
    %970 = vmatpush1.msra.mxu0 0.0
    %971 = vmatprep.subr.mxu0 0.0
    %972 = vmatpush1.msra.mxu0 0.0
    %973 = vmatprep.subr.mxu0 0.0
    %974 = vmatpush1.msra.mxu0 0.0
    %975 = vmatprep.subr.mxu0 0.0
    %976 = vmatpush1.msra.mxu0 0.0
    %977 = vmatprep.subr.mxu0 0.0
    %978 = vmatpush1.msra.mxu0 0.0
    %979 = vmatprep.subr.mxu0 0.0
    %980 = vmatpush1.msra.mxu0 0.0
    %981 = vmatprep.subr.mxu0 0.0
    %982 = vmatpush1.msra.mxu0 0.0
    %983 = vmatprep.subr.mxu0 0.0
    %984 = vmatpush1.msra.mxu0 0.0
    %985 = vmatprep.mubr.f32.mxu0 0.0
    %986 = vmatmul.mubr.f32.gmra.mrb[0].mxu0 %v919
    %v987 = vpop.f32.mrb[0].mxu0
    %v988 = vadd.f32 %v78, %v987
    %v989 = vpop.f32.mrb[0].mxu0
    %990 = vdwg.mxu0
    %992 = vrot.lane.b32.xlu0 %v988, 104
    %v993 = vpop.permute.xlu0 %992
    %994 = vrot.lane.b32.xlu0 %v988, 80
    %v995 = vpop.permute.xlu0 %994
    %996 = vrot.lane.b32.xlu0 %v988, 56
    %v997 = vpop.permute.xlu0 %996
    %998 = vrot.lane.b32.xlu0 %v988, 120
    %v999 = vpop.permute.xlu0 %998
    %v1000 = vsel %vm163, %v988, 0
    %v1002 = vsel %vm163, %v999, 0
    %1004 = vmatprep.subr.mxu0 0.0
    %1005 = vmatpush1.xpose.msra.mxu0 %v1002
    %1006 = vmatprep.subr.mxu0 0.0
    %1007 = vmatpush1.xpose.msra.mxu0 0.0
    %1008 = vmatprep.subr.mxu0 0.0
    %1009 = vmatpush1.xpose.msra.mxu0 0.0
    %1010 = vmatprep.subr.mxu0 0.0
    %1011 = vmatpush1.xpose.msra.mxu0 0.0
    %1012 = vmatprep.subr.mxu0 0.0
    %1013 = vmatpush1.xpose.msra.mxu0 0.0
    %1014 = vmatprep.subr.mxu0 0.0
    %1015 = vmatpush1.xpose.msra.mxu0 0.0
    %1016 = vmatprep.subr.mxu0 0.0
    %1017 = vmatpush1.xpose.msra.mxu0 0.0
    %1018 = vmatprep.subr.mxu0 0.0
    %1019 = vmatpush1.xpose.msra.mxu0 0.0
    %1020 = vmatprep.subr.mxu0 0.0
    %1021 = vmatpush1.xpose.msra.mxu0 0.0
    %1022 = vmatprep.subr.mxu0 0.0
    %1023 = vmatpush1.xpose.msra.mxu0 0.0
    %1024 = vmatprep.subr.mxu0 0.0
    %1025 = vmatpush1.xpose.msra.mxu0 0.0
    %1026 = vmatprep.subr.mxu0 0.0
    %1027 = vmatpush1.xpose.msra.mxu0 0.0
    %1028 = vmatprep.subr.mxu0 0.0
    %1029 = vmatpush1.xpose.msra.mxu0 0.0
    %1030 = vmatprep.subr.mxu0 0.0
    %1031 = vmatpush1.xpose.msra.mxu0 0.0
    %1032 = vmatprep.subr.mxu0 0.0
    %1033 = vmatpush1.xpose.msra.mxu0 0.0
    %1034 = vmatprep.subr.mxu0 0.0
    %1035 = vmatpush1.xpose.msra.mxu0 0.0
    %1036 = vmatprep.subr.mxu0 0.0
    %1037 = vmatpush1.xpose.msra.mxu0 0.0
    %1038 = vmatprep.subr.mxu0 0.0
    %1039 = vmatpush1.xpose.msra.mxu0 0.0
    %1040 = vmatprep.subr.mxu0 0.0
    %1041 = vmatpush1.xpose.msra.mxu0 0.0
    %1042 = vmatprep.subr.mxu0 0.0
    %1043 = vmatpush1.xpose.msra.mxu0 0.0
    %1044 = vmatprep.subr.mxu0 0.0
    %1045 = vmatpush1.xpose.msra.mxu0 0.0
    %1046 = vmatprep.subr.mxu0 0.0
    %1047 = vmatpush1.xpose.msra.mxu0 0.0
    %1048 = vmatprep.subr.mxu0 0.0
    %1049 = vmatpush1.xpose.msra.mxu0 0.0
    %1050 = vmatprep.subr.mxu0 0.0
    %1051 = vmatpush1.xpose.msra.mxu0 0.0
    %1052 = vmatprep.subr.mxu0 0.0
    %1053 = vmatpush1.xpose.msra.mxu0 0.0
    %1054 = vmatprep.subr.mxu0 0.0
    %1055 = vmatpush1.xpose.msra.mxu0 0.0
    %1056 = vmatprep.subr.mxu0 0.0
    %1057 = vmatpush1.xpose.msra.mxu0 0.0
    %1058 = vmatprep.subr.mxu0 0.0
    %1059 = vmatpush1.xpose.msra.mxu0 0.0
    %1060 = vmatprep.subr.mxu0 0.0
    %1061 = vmatpush1.xpose.msra.mxu0 0.0
    %1062 = vmatprep.subr.mxu0 0.0
    %1063 = vmatpush1.xpose.msra.mxu0 0.0
    %1064 = vmatprep.subr.mxu0 0.0
    %1065 = vmatpush1.xpose.msra.mxu0 0.0
    %1066 = vmatprep.subr.mxu0 0.0
    %1067 = vmatpush1.xpose.msra.mxu0 0.0
    %1068 = vmatprep.mubr.f32.mxu0 0.0
    %1069 = vmatmul.mubr.f32.gmra.mrb[0].mxu0 %v1000
    %v1070 = vpop.f32.mrb[0].mxu0
    %v1071 = vadd.f32 0.0, %v1070
    %v1072 = vpop.f32.mrb[0].mxu0
    %1073 = vdwg.mxu0
    %1074 = vrot.lane.b32.xlu0 %v993, 120
    %v1075 = vpop.permute.xlu0 %1074
    %v1076 = vsel %vm163, %v993, 0
    %v1078 = vsel %vm163, %v1075, 0
    %1080 = vmatprep.subr.mxu0 0.0
    %1081 = vmatpush1.xpose.msra.mxu0 %v1078
    %1082 = vmatprep.subr.mxu0 0.0
    %1083 = vmatpush1.xpose.msra.mxu0 0.0
    %1084 = vmatprep.subr.mxu0 0.0
    %1085 = vmatpush1.xpose.msra.mxu0 0.0
    %1086 = vmatprep.subr.mxu0 0.0
    %1087 = vmatpush1.xpose.msra.mxu0 0.0
    %1088 = vmatprep.subr.mxu0 0.0
    %1089 = vmatpush1.xpose.msra.mxu0 0.0
    %1090 = vmatprep.subr.mxu0 0.0
    %1091 = vmatpush1.xpose.msra.mxu0 0.0
    %1092 = vmatprep.subr.mxu0 0.0
    %1093 = vmatpush1.xpose.msra.mxu0 0.0
    %1094 = vmatprep.subr.mxu0 0.0
    %1095 = vmatpush1.xpose.msra.mxu0 0.0
    %1096 = vmatprep.subr.mxu0 0.0
    %1097 = vmatpush1.xpose.msra.mxu0 0.0
    %1098 = vmatprep.subr.mxu0 0.0
    %1099 = vmatpush1.xpose.msra.mxu0 0.0
    %1100 = vmatprep.subr.mxu0 0.0
    %1101 = vmatpush1.xpose.msra.mxu0 0.0
    %1102 = vmatprep.subr.mxu0 0.0
    %1103 = vmatpush1.xpose.msra.mxu0 0.0
    %1104 = vmatprep.subr.mxu0 0.0
    %1105 = vmatpush1.xpose.msra.mxu0 0.0
    %1106 = vmatprep.subr.mxu0 0.0
    %1107 = vmatpush1.xpose.msra.mxu0 0.0
    %1108 = vmatprep.subr.mxu0 0.0
    %1109 = vmatpush1.xpose.msra.mxu0 0.0
    %1110 = vmatprep.subr.mxu0 0.0
    %1111 = vmatpush1.xpose.msra.mxu0 0.0
    %1112 = vmatprep.subr.mxu0 0.0
    %1113 = vmatpush1.xpose.msra.mxu0 0.0
    %1114 = vmatprep.subr.mxu0 0.0
    %1115 = vmatpush1.xpose.msra.mxu0 0.0
    %1116 = vmatprep.subr.mxu0 0.0
    %1117 = vmatpush1.xpose.msra.mxu0 0.0
    %1118 = vmatprep.subr.mxu0 0.0
    %1119 = vmatpush1.xpose.msra.mxu0 0.0
    %1120 = vmatprep.subr.mxu0 0.0
    %1121 = vmatpush1.xpose.msra.mxu0 0.0
    %1122 = vmatprep.subr.mxu0 0.0
    %1123 = vmatpush1.xpose.msra.mxu0 0.0
    %1124 = vmatprep.subr.mxu0 0.0
    %1125 = vmatpush1.xpose.msra.mxu0 0.0
    %1126 = vmatprep.subr.mxu0 0.0
    %1127 = vmatpush1.xpose.msra.mxu0 0.0
    %1128 = vmatprep.subr.mxu0 0.0
    %1129 = vmatpush1.xpose.msra.mxu0 0.0
    %1130 = vmatprep.subr.mxu0 0.0
    %1131 = vmatpush1.xpose.msra.mxu0 0.0
    %1132 = vmatprep.subr.mxu0 0.0
    %1133 = vmatpush1.xpose.msra.mxu0 0.0
    %1134 = vmatprep.subr.mxu0 0.0
    %1135 = vmatpush1.xpose.msra.mxu0 0.0
    %1136 = vmatprep.subr.mxu0 0.0
    %1137 = vmatpush1.xpose.msra.mxu0 0.0
    %1138 = vmatprep.subr.mxu0 0.0
    %1139 = vmatpush1.xpose.msra.mxu0 0.0
    %1140 = vmatprep.subr.mxu0 0.0
    %1141 = vmatpush1.xpose.msra.mxu0 0.0
    %1142 = vmatprep.subr.mxu0 0.0
    %1143 = vmatpush1.xpose.msra.mxu0 0.0
    %1144 = vmatprep.mubr.f32.mxu0 0.0
    %1145 = vmatmul.mubr.f32.gmra.mrb[0].mxu0 %v1076
    %v1146 = vpop.f32.mrb[0].mxu0
    %v1147 = vadd.f32 0.0, %v1146
    %v1148 = vpop.f32.mrb[0].mxu0
    %1149 = vdwg.mxu0
    %1150 = vrot.lane.b32.xlu0 %v995, 120
    %v1151 = vpop.permute.xlu0 %1150
    %v1152 = vsel %vm163, %v995, 0
    %v1154 = vsel %vm163, %v1151, 0
    %1156 = vmatprep.subr.mxu0 0.0
    %1157 = vmatpush1.xpose.msra.mxu0 %v1154
    %1158 = vmatprep.subr.mxu0 0.0
    %1159 = vmatpush1.xpose.msra.mxu0 0.0
    %1160 = vmatprep.subr.mxu0 0.0
    %1161 = vmatpush1.xpose.msra.mxu0 0.0
    %1162 = vmatprep.subr.mxu0 0.0
    %1163 = vmatpush1.xpose.msra.mxu0 0.0
    %1164 = vmatprep.subr.mxu0 0.0
    %1165 = vmatpush1.xpose.msra.mxu0 0.0
    %1166 = vmatprep.subr.mxu0 0.0
    %1167 = vmatpush1.xpose.msra.mxu0 0.0
    %1168 = vmatprep.subr.mxu0 0.0
    %1169 = vmatpush1.xpose.msra.mxu0 0.0
    %1170 = vmatprep.subr.mxu0 0.0
    %1171 = vmatpush1.xpose.msra.mxu0 0.0
    %1172 = vmatprep.subr.mxu0 0.0
    %1173 = vmatpush1.xpose.msra.mxu0 0.0
    %1174 = vmatprep.subr.mxu0 0.0
    %1175 = vmatpush1.xpose.msra.mxu0 0.0
    %1176 = vmatprep.subr.mxu0 0.0
    %1177 = vmatpush1.xpose.msra.mxu0 0.0
    %1178 = vmatprep.subr.mxu0 0.0
    %1179 = vmatpush1.xpose.msra.mxu0 0.0
    %1180 = vmatprep.subr.mxu0 0.0
    %1181 = vmatpush1.xpose.msra.mxu0 0.0
    %1182 = vmatprep.subr.mxu0 0.0
    %1183 = vmatpush1.xpose.msra.mxu0 0.0
    %1184 = vmatprep.subr.mxu0 0.0
    %1185 = vmatpush1.xpose.msra.mxu0 0.0
    %1186 = vmatprep.subr.mxu0 0.0
    %1187 = vmatpush1.xpose.msra.mxu0 0.0
    %1188 = vmatprep.subr.mxu0 0.0
    %1189 = vmatpush1.xpose.msra.mxu0 0.0
    %1190 = vmatprep.subr.mxu0 0.0
    %1191 = vmatpush1.xpose.msra.mxu0 0.0
    %1192 = vmatprep.subr.mxu0 0.0
    %1193 = vmatpush1.xpose.msra.mxu0 0.0
    %1194 = vmatprep.subr.mxu0 0.0
    %1195 = vmatpush1.xpose.msra.mxu0 0.0
    %1196 = vmatprep.subr.mxu0 0.0
    %1197 = vmatpush1.xpose.msra.mxu0 0.0
    %1198 = vmatprep.subr.mxu0 0.0
    %1199 = vmatpush1.xpose.msra.mxu0 0.0
    %1200 = vmatprep.subr.mxu0 0.0
    %1201 = vmatpush1.xpose.msra.mxu0 0.0
    %1202 = vmatprep.subr.mxu0 0.0
    %1203 = vmatpush1.xpose.msra.mxu0 0.0
    %1204 = vmatprep.subr.mxu0 0.0
    %1205 = vmatpush1.xpose.msra.mxu0 0.0
    %1206 = vmatprep.subr.mxu0 0.0
    %1207 = vmatpush1.xpose.msra.mxu0 0.0
    %1208 = vmatprep.subr.mxu0 0.0
    %1209 = vmatpush1.xpose.msra.mxu0 0.0
    %1210 = vmatprep.subr.mxu0 0.0
    %1211 = vmatpush1.xpose.msra.mxu0 0.0
    %1212 = vmatprep.subr.mxu0 0.0
    %1213 = vmatpush1.xpose.msra.mxu0 0.0
    %1214 = vmatprep.subr.mxu0 0.0
    %1215 = vmatpush1.xpose.msra.mxu0 0.0
    %1216 = vmatprep.subr.mxu0 0.0
    %1217 = vmatpush1.xpose.msra.mxu0 0.0
    %1218 = vmatprep.subr.mxu0 0.0
    %1219 = vmatpush1.xpose.msra.mxu0 0.0
    %1220 = vmatprep.mubr.f32.mxu0 0.0
    %1221 = vmatmul.mubr.f32.gmra.mrb[0].mxu0 %v1152
    %v1222 = vpop.f32.mrb[0].mxu0
    %v1223 = vadd.f32 0.0, %v1222
    %v1224 = vpop.f32.mrb[0].mxu0
    %1225 = vdwg.mxu0
    %1226 = vrot.lane.b32.xlu0 %v997, 120
    %v1227 = vpop.permute.xlu0 %1226
    %v1228 = vsel %vm163, %v997, 0
    %v1230 = vsel %vm163, %v1227, 0
    %1232 = vmatprep.subr.mxu0 0.0
    %1233 = vmatpush1.xpose.msra.mxu0 %v1230
    %1234 = vmatprep.subr.mxu0 0.0
    %1235 = vmatpush1.xpose.msra.mxu0 0.0
    %1236 = vmatprep.subr.mxu0 0.0
    %1237 = vmatpush1.xpose.msra.mxu0 0.0
    %1238 = vmatprep.subr.mxu0 0.0
    %1239 = vmatpush1.xpose.msra.mxu0 0.0
    %1240 = vmatprep.subr.mxu0 0.0
    %1241 = vmatpush1.xpose.msra.mxu0 0.0
    %1242 = vmatprep.subr.mxu0 0.0
    %1243 = vmatpush1.xpose.msra.mxu0 0.0
    %1244 = vmatprep.subr.mxu0 0.0
    %1245 = vmatpush1.xpose.msra.mxu0 0.0
    %1246 = vmatprep.subr.mxu0 0.0
    %1247 = vmatpush1.xpose.msra.mxu0 0.0
    %1248 = vmatprep.subr.mxu0 0.0
    %1249 = vmatpush1.xpose.msra.mxu0 0.0
    %1250 = vmatprep.subr.mxu0 0.0
    %1251 = vmatpush1.xpose.msra.mxu0 0.0
    %1252 = vmatprep.subr.mxu0 0.0
    %1253 = vmatpush1.xpose.msra.mxu0 0.0
    %1254 = vmatprep.subr.mxu0 0.0
    %1255 = vmatpush1.xpose.msra.mxu0 0.0
    %1256 = vmatprep.subr.mxu0 0.0
    %1257 = vmatpush1.xpose.msra.mxu0 0.0
    %1258 = vmatprep.subr.mxu0 0.0
    %1259 = vmatpush1.xpose.msra.mxu0 0.0
    %1260 = vmatprep.subr.mxu0 0.0
    %1261 = vmatpush1.xpose.msra.mxu0 0.0
    %1262 = vmatprep.subr.mxu0 0.0
    %1263 = vmatpush1.xpose.msra.mxu0 0.0
    %1264 = vmatprep.subr.mxu0 0.0
    %1265 = vmatpush1.xpose.msra.mxu0 0.0
    %1266 = vmatprep.subr.mxu0 0.0
    %1267 = vmatpush1.xpose.msra.mxu0 0.0
    %1268 = vmatprep.subr.mxu0 0.0
    %1269 = vmatpush1.xpose.msra.mxu0 0.0
    %1270 = vmatprep.subr.mxu0 0.0
    %1271 = vmatpush1.xpose.msra.mxu0 0.0
    %1272 = vmatprep.subr.mxu0 0.0
    %1273 = vmatpush1.xpose.msra.mxu0 0.0
    %1274 = vmatprep.subr.mxu0 0.0
    %1275 = vmatpush1.xpose.msra.mxu0 0.0
    %1276 = vmatprep.subr.mxu0 0.0
    %1277 = vmatpush1.xpose.msra.mxu0 0.0
    %1278 = vmatprep.subr.mxu0 0.0
    %1279 = vmatpush1.xpose.msra.mxu0 0.0
    %1280 = vmatprep.subr.mxu0 0.0
    %1281 = vmatpush1.xpose.msra.mxu0 0.0
    %1282 = vmatprep.subr.mxu0 0.0
    %1283 = vmatpush1.xpose.msra.mxu0 0.0
    %1284 = vmatprep.subr.mxu0 0.0
    %1285 = vmatpush1.xpose.msra.mxu0 0.0
    %1286 = vmatprep.subr.mxu0 0.0
    %1287 = vmatpush1.xpose.msra.mxu0 0.0
    %1288 = vmatprep.subr.mxu0 0.0
    %1289 = vmatpush1.xpose.msra.mxu0 0.0
    %1290 = vmatprep.subr.mxu0 0.0
    %1291 = vmatpush1.xpose.msra.mxu0 0.0
    %1292 = vmatprep.subr.mxu0 0.0
    %1293 = vmatpush1.xpose.msra.mxu0 0.0
    %1294 = vmatprep.subr.mxu0 0.0
    %1295 = vmatpush1.xpose.msra.mxu0 0.0
    %1296 = vmatprep.mubr.f32.mxu0 0.0
    %1297 = vmatmul.mubr.f32.gmra.mrb[0].mxu0 %v1228
    %v1298 = vpop.f32.mrb[0].mxu0
    %v1299 = vadd.f32 0.0, %v1298
    %v1300 = vpop.f32.mrb[0].mxu0
    %1301 = vdwg.mxu0
    %v1302 = vmul.f32 %v1071, 0.35355338
    %v1303 = vmul.f32 %v1147, 0.35355338
    %v1304 = vmul.f32 %v1223, 0.35355338
    %v1305 = vmul.f32 %v1299, 0.35355338
    %v1306 = vsel %vm72, %v1302, -inf
    %v1307 = vsel %vm72, %v1303, -inf
    %v1308 = vsel %vm72, %v1304, -inf
    %v1309 = vsel %vm72, %v1305, -inf
    %v1310 = vsel %vm163, %v1306, -inf
    %1311 = vmax.xlane.f32.xlu0 %v1310
    %v1312 = vpop.xlane.xlu0 %1311
    %v1313 = vsel %vm163, %v1307, -inf
    %1314 = vmax.xlane.f32.xlu0 %v1313
    %v1315 = vpop.xlane.xlu0 %1314
    %v1316 = vsel %vm163, %v1308, -inf
    %1317 = vmax.xlane.f32.xlu0 %v1316
    %v1318 = vpop.xlane.xlu0 %1317
    %v1319 = vsel %vm163, %v1309, -inf
    %1320 = vmax.xlane.f32.xlu0 %v1319
    %v1321 = vpop.xlane.xlu0 %1320
    %v1322 = vsub.f32 %v1306, %v1312
    %v1323 = vsub.f32 %v1307, %v1315
    %v1324 = vsub.f32 %v1308, %v1318
    %v1325 = vsub.f32 %v1309, %v1321
    %v1326 = vmul.f32 %v1322, 1.442695
    %v1327 = vpow.pop %v1326
    %v1328 = vmul.f32 %v1323, 1.442695
    %v1329 = vpow.pop %v1328
    %v1330 = vmul.f32 %v1324, 1.442695
    %v1331 = vpow.pop %v1330
    %v1332 = vmul.f32 %v1325, 1.442695
    %v1333 = vpow.pop %v1332
    %v1334 = vsel %vm163, %v1327, 0.0
    %1335 = vadd.xlane.f32.xlu0 %v1334
    %v1336 = vpop.xlane.xlu0 %1335
    %v1337 = vsel %vm163, %v1329, 0.0
    %1338 = vadd.xlane.f32.xlu0 %v1337
    %v1339 = vpop.xlane.xlu0 %1338
    %v1340 = vsel %vm163, %v1331, 0.0
    %1341 = vadd.xlane.f32.xlu0 %v1340
    %v1342 = vpop.xlane.xlu0 %1341
    %v1343 = vsel %vm163, %v1333, 0.0
    %1344 = vadd.xlane.f32.xlu0 %v1343
    %v1345 = vpop.xlane.xlu0 %1344
    %v1346 = vrcp.pop %v1336
    %v1347 = vmul.f32 %v1327, %v1346
    %v1348 = vrcp.pop %v1339
    %v1349 = vmul.f32 %v1329, %v1348
    %v1350 = vrcp.pop %v1342
    %v1351 = vmul.f32 %v1331, %v1350
    %v1352 = vrcp.pop %v1345
    %v1353 = vmul.f32 %v1333, %v1352
    %1354 = vrot.lane.b32.xlu0 %v988, 112
    %v1355 = vpop.permute.xlu0 %1354
    %v1358 = vsel %vm163, %v1347, 0
    %1360 = vmatprep.subr.mxu0 0.0
    %1361 = vmatpush1.msra.mxu0 %v1355
    %1362 = vmatprep.subr.mxu0 0.0
    %1363 = vmatpush1.msra.mxu0 0.0
    %1364 = vmatprep.subr.mxu0 0.0
    %1365 = vmatpush1.msra.mxu0 0.0
    %1366 = vmatprep.subr.mxu0 0.0
    %1367 = vmatpush1.msra.mxu0 0.0
    %1368 = vmatprep.subr.mxu0 0.0
    %1369 = vmatpush1.msra.mxu0 0.0
    %1370 = vmatprep.subr.mxu0 0.0
    %1371 = vmatpush1.msra.mxu0 0.0
    %1372 = vmatprep.subr.mxu0 0.0
    %1373 = vmatpush1.msra.mxu0 0.0
    %1374 = vmatprep.subr.mxu0 0.0
    %1375 = vmatpush1.msra.mxu0 0.0
    %1376 = vmatprep.subr.mxu0 0.0
    %1377 = vmatpush1.msra.mxu0 0.0
    %1378 = vmatprep.subr.mxu0 0.0
    %1379 = vmatpush1.msra.mxu0 0.0
    %1380 = vmatprep.subr.mxu0 0.0
    %1381 = vmatpush1.msra.mxu0 0.0
    %1382 = vmatprep.subr.mxu0 0.0
    %1383 = vmatpush1.msra.mxu0 0.0
    %1384 = vmatprep.subr.mxu0 0.0
    %1385 = vmatpush1.msra.mxu0 0.0
    %1386 = vmatprep.subr.mxu0 0.0
    %1387 = vmatpush1.msra.mxu0 0.0
    %1388 = vmatprep.subr.mxu0 0.0
    %1389 = vmatpush1.msra.mxu0 0.0
    %1390 = vmatprep.subr.mxu0 0.0
    %1391 = vmatpush1.msra.mxu0 0.0
    %1392 = vmatprep.subr.mxu0 0.0
    %1393 = vmatpush1.msra.mxu0 0.0
    %1394 = vmatprep.subr.mxu0 0.0
    %1395 = vmatpush1.msra.mxu0 0.0
    %1396 = vmatprep.subr.mxu0 0.0
    %1397 = vmatpush1.msra.mxu0 0.0
    %1398 = vmatprep.subr.mxu0 0.0
    %1399 = vmatpush1.msra.mxu0 0.0
    %1400 = vmatprep.subr.mxu0 0.0
    %1401 = vmatpush1.msra.mxu0 0.0
    %1402 = vmatprep.subr.mxu0 0.0
    %1403 = vmatpush1.msra.mxu0 0.0
    %1404 = vmatprep.subr.mxu0 0.0
    %1405 = vmatpush1.msra.mxu0 0.0
    %1406 = vmatprep.subr.mxu0 0.0
    %1407 = vmatpush1.msra.mxu0 0.0
    %1408 = vmatprep.subr.mxu0 0.0
    %1409 = vmatpush1.msra.mxu0 0.0
    %1410 = vmatprep.subr.mxu0 0.0
    %1411 = vmatpush1.msra.mxu0 0.0
    %1412 = vmatprep.subr.mxu0 0.0
    %1413 = vmatpush1.msra.mxu0 0.0
    %1414 = vmatprep.subr.mxu0 0.0
    %1415 = vmatpush1.msra.mxu0 0.0
    %1416 = vmatprep.subr.mxu0 0.0
    %1417 = vmatpush1.msra.mxu0 0.0
    %1418 = vmatprep.subr.mxu0 0.0
    %1419 = vmatpush1.msra.mxu0 0.0
    %1420 = vmatprep.subr.mxu0 0.0
    %1421 = vmatpush1.msra.mxu0 0.0
    %1422 = vmatprep.subr.mxu0 0.0
    %1423 = vmatpush1.msra.mxu0 0.0
    %1424 = vmatprep.mubr.f32.mxu0 0.0
    %1425 = vmatmul.mubr.f32.gmra.mrb[0].mxu0 %v1358
    %v1426 = vpop.f32.mrb[0].mxu0
    %v1427 = vadd.f32 0.0, %v1426
    %v1428 = vpop.f32.mrb[0].mxu0
    %1429 = vdwg.mxu0
    %1430 = vrot.lane.b32.xlu0 %v993, 112
    %v1431 = vpop.permute.xlu0 %1430
    %v1434 = vsel %vm163, %v1349, 0
    %1436 = vmatprep.subr.mxu0 0.0
    %1437 = vmatpush1.msra.mxu0 %v1431
    %1438 = vmatprep.subr.mxu0 0.0
    %1439 = vmatpush1.msra.mxu0 0.0
    %1440 = vmatprep.subr.mxu0 0.0
    %1441 = vmatpush1.msra.mxu0 0.0
    %1442 = vmatprep.subr.mxu0 0.0
    %1443 = vmatpush1.msra.mxu0 0.0
    %1444 = vmatprep.subr.mxu0 0.0
    %1445 = vmatpush1.msra.mxu0 0.0
    %1446 = vmatprep.subr.mxu0 0.0
    %1447 = vmatpush1.msra.mxu0 0.0
    %1448 = vmatprep.subr.mxu0 0.0
    %1449 = vmatpush1.msra.mxu0 0.0
    %1450 = vmatprep.subr.mxu0 0.0
    %1451 = vmatpush1.msra.mxu0 0.0
    %1452 = vmatprep.subr.mxu0 0.0
    %1453 = vmatpush1.msra.mxu0 0.0
    %1454 = vmatprep.subr.mxu0 0.0
    %1455 = vmatpush1.msra.mxu0 0.0
    %1456 = vmatprep.subr.mxu0 0.0
    %1457 = vmatpush1.msra.mxu0 0.0
    %1458 = vmatprep.subr.mxu0 0.0
    %1459 = vmatpush1.msra.mxu0 0.0
    %1460 = vmatprep.subr.mxu0 0.0
    %1461 = vmatpush1.msra.mxu0 0.0
    %1462 = vmatprep.subr.mxu0 0.0
    %1463 = vmatpush1.msra.mxu0 0.0
    %1464 = vmatprep.subr.mxu0 0.0
    %1465 = vmatpush1.msra.mxu0 0.0
    %1466 = vmatprep.subr.mxu0 0.0
    %1467 = vmatpush1.msra.mxu0 0.0
    %1468 = vmatprep.subr.mxu0 0.0
    %1469 = vmatpush1.msra.mxu0 0.0
    %1470 = vmatprep.subr.mxu0 0.0
    %1471 = vmatpush1.msra.mxu0 0.0
    %1472 = vmatprep.subr.mxu0 0.0
    %1473 = vmatpush1.msra.mxu0 0.0
    %1474 = vmatprep.subr.mxu0 0.0
    %1475 = vmatpush1.msra.mxu0 0.0
    %1476 = vmatprep.subr.mxu0 0.0
    %1477 = vmatpush1.msra.mxu0 0.0
    %1478 = vmatprep.subr.mxu0 0.0
    %1479 = vmatpush1.msra.mxu0 0.0
    %1480 = vmatprep.subr.mxu0 0.0
    %1481 = vmatpush1.msra.mxu0 0.0
    %1482 = vmatprep.subr.mxu0 0.0
    %1483 = vmatpush1.msra.mxu0 0.0
    %1484 = vmatprep.subr.mxu0 0.0
    %1485 = vmatpush1.msra.mxu0 0.0
    %1486 = vmatprep.subr.mxu0 0.0
    %1487 = vmatpush1.msra.mxu0 0.0
    %1488 = vmatprep.subr.mxu0 0.0
    %1489 = vmatpush1.msra.mxu0 0.0
    %1490 = vmatprep.subr.mxu0 0.0
    %1491 = vmatpush1.msra.mxu0 0.0
    %1492 = vmatprep.subr.mxu0 0.0
    %1493 = vmatpush1.msra.mxu0 0.0
    %1494 = vmatprep.subr.mxu0 0.0
    %1495 = vmatpush1.msra.mxu0 0.0
    %1496 = vmatprep.subr.mxu0 0.0
    %1497 = vmatpush1.msra.mxu0 0.0
    %1498 = vmatprep.subr.mxu0 0.0
    %1499 = vmatpush1.msra.mxu0 0.0
    %1500 = vmatprep.mubr.f32.mxu0 0.0
    %1501 = vmatmul.mubr.f32.gmra.mrb[0].mxu0 %v1434
    %v1502 = vpop.f32.mrb[0].mxu0
    %v1503 = vadd.f32 0.0, %v1502
    %v1504 = vpop.f32.mrb[0].mxu0
    %1505 = vdwg.mxu0
    %1506 = vrot.lane.b32.xlu0 %v995, 112
    %v1507 = vpop.permute.xlu0 %1506
    %v1510 = vsel %vm163, %v1351, 0
    %1512 = vmatprep.subr.mxu0 0.0
    %1513 = vmatpush1.msra.mxu0 %v1507
    %1514 = vmatprep.subr.mxu0 0.0
    %1515 = vmatpush1.msra.mxu0 0.0
    %1516 = vmatprep.subr.mxu0 0.0
    %1517 = vmatpush1.msra.mxu0 0.0
    %1518 = vmatprep.subr.mxu0 0.0
    %1519 = vmatpush1.msra.mxu0 0.0
    %1520 = vmatprep.subr.mxu0 0.0
    %1521 = vmatpush1.msra.mxu0 0.0
    %1522 = vmatprep.subr.mxu0 0.0
    %1523 = vmatpush1.msra.mxu0 0.0
    %1524 = vmatprep.subr.mxu0 0.0
    %1525 = vmatpush1.msra.mxu0 0.0
    %1526 = vmatprep.subr.mxu0 0.0
    %1527 = vmatpush1.msra.mxu0 0.0
    %1528 = vmatprep.subr.mxu0 0.0
    %1529 = vmatpush1.msra.mxu0 0.0
    %1530 = vmatprep.subr.mxu0 0.0
    %1531 = vmatpush1.msra.mxu0 0.0
    %1532 = vmatprep.subr.mxu0 0.0
    %1533 = vmatpush1.msra.mxu0 0.0
    %1534 = vmatprep.subr.mxu0 0.0
    %1535 = vmatpush1.msra.mxu0 0.0
    %1536 = vmatprep.subr.mxu0 0.0
    %1537 = vmatpush1.msra.mxu0 0.0
    %1538 = vmatprep.subr.mxu0 0.0
    %1539 = vmatpush1.msra.mxu0 0.0
    %1540 = vmatprep.subr.mxu0 0.0
    %1541 = vmatpush1.msra.mxu0 0.0
    %1542 = vmatprep.subr.mxu0 0.0
    %1543 = vmatpush1.msra.mxu0 0.0
    %1544 = vmatprep.subr.mxu0 0.0
    %1545 = vmatpush1.msra.mxu0 0.0
    %1546 = vmatprep.subr.mxu0 0.0
    %1547 = vmatpush1.msra.mxu0 0.0
    %1548 = vmatprep.subr.mxu0 0.0
    %1549 = vmatpush1.msra.mxu0 0.0
    %1550 = vmatprep.subr.mxu0 0.0
    %1551 = vmatpush1.msra.mxu0 0.0
    %1552 = vmatprep.subr.mxu0 0.0
    %1553 = vmatpush1.msra.mxu0 0.0
    %1554 = vmatprep.subr.mxu0 0.0
    %1555 = vmatpush1.msra.mxu0 0.0
    %1556 = vmatprep.subr.mxu0 0.0
    %1557 = vmatpush1.msra.mxu0 0.0
    %1558 = vmatprep.subr.mxu0 0.0
    %1559 = vmatpush1.msra.mxu0 0.0
    %1560 = vmatprep.subr.mxu0 0.0
    %1561 = vmatpush1.msra.mxu0 0.0
    %1562 = vmatprep.subr.mxu0 0.0
    %1563 = vmatpush1.msra.mxu0 0.0
    %1564 = vmatprep.subr.mxu0 0.0
    %1565 = vmatpush1.msra.mxu0 0.0
    %1566 = vmatprep.subr.mxu0 0.0
    %1567 = vmatpush1.msra.mxu0 0.0
    %1568 = vmatprep.subr.mxu0 0.0
    %1569 = vmatpush1.msra.mxu0 0.0
    %1570 = vmatprep.subr.mxu0 0.0
    %1571 = vmatpush1.msra.mxu0 0.0
    %1572 = vmatprep.subr.mxu0 0.0
    %1573 = vmatpush1.msra.mxu0 0.0
    %1574 = vmatprep.subr.mxu0 0.0
    %1575 = vmatpush1.msra.mxu0 0.0
    %1576 = vmatprep.mubr.f32.mxu0 0.0
    %1577 = vmatmul.mubr.f32.gmra.mrb[0].mxu0 %v1510
    %v1578 = vpop.f32.mrb[0].mxu0
    %v1579 = vadd.f32 0.0, %v1578
    %v1580 = vpop.f32.mrb[0].mxu0
    %1581 = vdwg.mxu0
    %1582 = vrot.lane.b32.xlu0 %v997, 112
    %v1583 = vpop.permute.xlu0 %1582
    %v1586 = vsel %vm163, %v1353, 0
    %1588 = vmatprep.subr.mxu0 0.0
    %1589 = vmatpush1.msra.mxu0 %v1583
    %1590 = vmatprep.subr.mxu0 0.0
    %1591 = vmatpush1.msra.mxu0 0.0
    %1592 = vmatprep.subr.mxu0 0.0
    %1593 = vmatpush1.msra.mxu0 0.0
    %1594 = vmatprep.subr.mxu0 0.0
    %1595 = vmatpush1.msra.mxu0 0.0
    %1596 = vmatprep.subr.mxu0 0.0
    %1597 = vmatpush1.msra.mxu0 0.0
    %1598 = vmatprep.subr.mxu0 0.0
    %1599 = vmatpush1.msra.mxu0 0.0
    %1600 = vmatprep.subr.mxu0 0.0
    %1601 = vmatpush1.msra.mxu0 0.0
    %1602 = vmatprep.subr.mxu0 0.0
    %1603 = vmatpush1.msra.mxu0 0.0
    %1604 = vmatprep.subr.mxu0 0.0
    %1605 = vmatpush1.msra.mxu0 0.0
    %1606 = vmatprep.subr.mxu0 0.0
    %1607 = vmatpush1.msra.mxu0 0.0
    %1608 = vmatprep.subr.mxu0 0.0
    %1609 = vmatpush1.msra.mxu0 0.0
    %1610 = vmatprep.subr.mxu0 0.0
    %1611 = vmatpush1.msra.mxu0 0.0
    %1612 = vmatprep.subr.mxu0 0.0
    %1613 = vmatpush1.msra.mxu0 0.0
    %1614 = vmatprep.subr.mxu0 0.0
    %1615 = vmatpush1.msra.mxu0 0.0
    %1616 = vmatprep.subr.mxu0 0.0
    %1617 = vmatpush1.msra.mxu0 0.0
    %1618 = vmatprep.subr.mxu0 0.0
    %1619 = vmatpush1.msra.mxu0 0.0
    %1620 = vmatprep.subr.mxu0 0.0
    %1621 = vmatpush1.msra.mxu0 0.0
    %1622 = vmatprep.subr.mxu0 0.0
    %1623 = vmatpush1.msra.mxu0 0.0
    %1624 = vmatprep.subr.mxu0 0.0
    %1625 = vmatpush1.msra.mxu0 0.0
    %1626 = vmatprep.subr.mxu0 0.0
    %1627 = vmatpush1.msra.mxu0 0.0
    %1628 = vmatprep.subr.mxu0 0.0
    %1629 = vmatpush1.msra.mxu0 0.0
    %1630 = vmatprep.subr.mxu0 0.0
    %1631 = vmatpush1.msra.mxu0 0.0
    %1632 = vmatprep.subr.mxu0 0.0
    %1633 = vmatpush1.msra.mxu0 0.0
    %1634 = vmatprep.subr.mxu0 0.0
    %1635 = vmatpush1.msra.mxu0 0.0
    %1636 = vmatprep.subr.mxu0 0.0
    %1637 = vmatpush1.msra.mxu0 0.0
    %1638 = vmatprep.subr.mxu0 0.0
    %1639 = vmatpush1.msra.mxu0 0.0
    %1640 = vmatprep.subr.mxu0 0.0
    %1641 = vmatpush1.msra.mxu0 0.0
    %1642 = vmatprep.subr.mxu0 0.0
    %1643 = vmatpush1.msra.mxu0 0.0
    %1644 = vmatprep.subr.mxu0 0.0
    %1645 = vmatpush1.msra.mxu0 0.0
    %1646 = vmatprep.subr.mxu0 0.0
    %1647 = vmatpush1.msra.mxu0 0.0
    %1648 = vmatprep.subr.mxu0 0.0
    %1649 = vmatpush1.msra.mxu0 0.0
    %1650 = vmatprep.subr.mxu0 0.0
    %1651 = vmatpush1.msra.mxu0 0.0
    %1652 = vmatprep.mubr.f32.mxu0 0.0
    %1653 = vmatmul.mubr.f32.gmra.mrb[0].mxu0 %v1586
    %v1654 = vpop.f32.mrb[0].mxu0
    %v1655 = vadd.f32 0.0, %v1654
    %v1656 = vpop.f32.mrb[0].mxu0
    %1657 = vdwg.mxu0
    %1659 = vrot.lane.b32.xlu0 %v1503, 8
    %v1660 = vpop.permute.xlu0 %1659
    %1663 = vrot.lane.b32.xlu0 %v1579, 16
    %v1664 = vpop.permute.xlu0 %1663
    %1667 = vrot.lane.b32.xlu0 %v1655, 24
    %v1668 = vpop.permute.xlu0 %1667
    %v1670 = vsel %vm163, %v1427, %v1660
    %v1671 = vsel %vm835, %v1670, %v1664
    %v1672 = vsel %vm837, %v1671, %v1668
    %v1674 = vsel %vm80, %v1672, 0
    %1676 = vmatprep.subr.mxu0 0.0
    %1677 = vmatpush1.msra.mxu0 %v63
    %1678 = vmatprep.subr.mxu0 0.0
    %1679 = vmatpush1.msra.mxu0 %v64
    %1680 = vmatprep.subr.mxu0 0.0
    %1681 = vmatpush1.msra.mxu0 %v65
    %1682 = vmatprep.subr.mxu0 0.0
    %1683 = vmatpush1.msra.mxu0 %v66
    %1684 = vmatprep.subr.mxu0 0.0
    %1685 = vmatpush1.msra.mxu0 0.0
    %1686 = vmatprep.subr.mxu0 0.0
    %1687 = vmatpush1.msra.mxu0 0.0
    %1688 = vmatprep.subr.mxu0 0.0
    %1689 = vmatpush1.msra.mxu0 0.0
    %1690 = vmatprep.subr.mxu0 0.0
    %1691 = vmatpush1.msra.mxu0 0.0
    %1692 = vmatprep.subr.mxu0 0.0
    %1693 = vmatpush1.msra.mxu0 0.0
    %1694 = vmatprep.subr.mxu0 0.0
    %1695 = vmatpush1.msra.mxu0 0.0
    %1696 = vmatprep.subr.mxu0 0.0
    %1697 = vmatpush1.msra.mxu0 0.0
    %1698 = vmatprep.subr.mxu0 0.0
    %1699 = vmatpush1.msra.mxu0 0.0
    %1700 = vmatprep.subr.mxu0 0.0
    %1701 = vmatpush1.msra.mxu0 0.0
    %1702 = vmatprep.subr.mxu0 0.0
    %1703 = vmatpush1.msra.mxu0 0.0
    %1704 = vmatprep.subr.mxu0 0.0
    %1705 = vmatpush1.msra.mxu0 0.0
    %1706 = vmatprep.subr.mxu0 0.0
    %1707 = vmatpush1.msra.mxu0 0.0
    %1708 = vmatprep.subr.mxu0 0.0
    %1709 = vmatpush1.msra.mxu0 0.0
    %1710 = vmatprep.subr.mxu0 0.0
    %1711 = vmatpush1.msra.mxu0 0.0
    %1712 = vmatprep.subr.mxu0 0.0
    %1713 = vmatpush1.msra.mxu0 0.0
    %1714 = vmatprep.subr.mxu0 0.0
    %1715 = vmatpush1.msra.mxu0 0.0
    %1716 = vmatprep.subr.mxu0 0.0
    %1717 = vmatpush1.msra.mxu0 0.0
    %1718 = vmatprep.subr.mxu0 0.0
    %1719 = vmatpush1.msra.mxu0 0.0
    %1720 = vmatprep.subr.mxu0 0.0
    %1721 = vmatpush1.msra.mxu0 0.0
    %1722 = vmatprep.subr.mxu0 0.0
    %1723 = vmatpush1.msra.mxu0 0.0
    %1724 = vmatprep.subr.mxu0 0.0
    %1725 = vmatpush1.msra.mxu0 0.0
    %1726 = vmatprep.subr.mxu0 0.0
    %1727 = vmatpush1.msra.mxu0 0.0
    %1728 = vmatprep.subr.mxu0 0.0
    %1729 = vmatpush1.msra.mxu0 0.0
    %1730 = vmatprep.subr.mxu0 0.0
    %1731 = vmatpush1.msra.mxu0 0.0
    %1732 = vmatprep.subr.mxu0 0.0
    %1733 = vmatpush1.msra.mxu0 0.0
    %1734 = vmatprep.subr.mxu0 0.0
    %1735 = vmatpush1.msra.mxu0 0.0
    %1736 = vmatprep.subr.mxu0 0.0
    %1737 = vmatpush1.msra.mxu0 0.0
    %1738 = vmatprep.subr.mxu0 0.0
    %1739 = vmatpush1.msra.mxu0 0.0
    %1740 = vmatprep.mubr.f32.mxu0 0.0
    %1741 = vmatmul.mubr.f32.gmra.mrb[0].mxu0 %v1674
    %v1742 = vpop.f32.mrb[0].mxu0
    %v1743 = vadd.f32 %v840, %v1742
    %v1744 = vpop.f32.mrb[0].mxu0
    %1745 = vdwg.mxu0
    %s1746 = scalar_lea.vmem [#allocation8], 8
    %1747 = vst.msk [vmem:[%s1746] sm:$0xff] %vm80, %v1743
    // Predicated region
    $region30: #{tpu_custom_call.1} parent=1 // pred_check
      _
    $region31: #{tpu_custom_call.1} parent=1 // pred_check_branch
      %1749 = sbr.rel (0) target = $region33
    $region32: #{tpu_custom_call.1} parent=1 // pred_region
      %s1751 = ssub.s32 256, 256
      %1752 = vsyncadd [#allocation4], %s1751
      %s1753 = sshll.u32 [#allocation8], 4
      %s1754 = int_to_ptr.vmem [resolvable:$true] %s1753
      %1759 = dma.vmem_to_hbm [thread:$0]  %s1754, 256, %s4, [#allocation4], 128, 128, 8
    $region33: #{tpu_custom_call.1} parent=1 // pred_fallthru
      _
    // Predicated region
    $region34: #{tpu_custom_call.1} parent=1 // pred_check
      _
    $region35: #{tpu_custom_call.1} parent=1 // pred_check_branch
      %1761 = sbr.rel (0) target = $region37
    $region36: #{tpu_custom_call.1} parent=1 // pred_region
      %1762 = dma.done [#allocation4], 256
    $region37: #{tpu_custom_call.1} parent=1 // pred_fallthru
      _
    %1763 = vsyncpa [#allocation3], 1
    %1764 = vsyncpa [#allocation6], 1
    %1765 = vsyncpa [#allocation4], 1

</llo_original>
